<compile_context>
chip_gen: v7x
topology: tpu7x:2x2x1
jax: 0.10.0
libtpu: 0.0.40
codegen_flags: <defaults>
</compile_context>

<pallas_src>
import functools
import math

import jax
import jax.numpy as jnp
from jax.experimental import pallas as pl
from jax.experimental.pallas import tpu as pltpu


_SMALL_K_MAX = 8                    # contractions this small stay on the VPU
_VMEM_BUDGET = 8 * 1024 * 1024      # conservative vs. v5e's 16 MiB scoped default
_TM_CAP = 32768                     # rows per grid step (lane-dense, cheap)


# ---------------------------------------------------------------------------
# Fused whole-network kernel.
# Layout: activations are (features, batch_tile); every layer computes
#     x <- sin( (w0*W) @ x + w0*b )
# with f32 accumulation.  The concat of the two encoder outputs happens
# in-kernel along the sublane (feature) axis.
# ---------------------------------------------------------------------------
def _make_fused_kernel(n_pos, n_fc, n_dec):
    n_layers = n_pos + n_fc + n_dec

    def layer(x, w_ref, b_ref):
        # x: (K, tm) f32;  w_ref: (N, K) = w0*W;  b_ref: (N, 1) = w0*b
        w = w_ref[...].astype(jnp.float32)
        b = b_ref[...].astype(jnp.float32)
        k_dim = w.shape[1]
        if k_dim <= _SMALL_K_MAX:
            # Tiny contraction: rank-1 updates on the VPU (skip the MXU).
            acc = w[:, 0:1] * x[0:1, :]
            for k in range(1, k_dim):
                acc = acc + w[:, k:k + 1] * x[k:k + 1, :]
        else:
            acc = jnp.dot(w, x, preferred_element_type=jnp.float32)
        return jnp.sin(acc + b)

    def kernel(*refs):
        xs_ref, xt_ref = refs[0], refs[1]
        wb = refs[2:2 + 2 * n_layers]
        o_ref = refs[-1]

        pairs = [(wb[2 * j], wb[2 * j + 1]) for j in range(n_layers)]
        pos_pairs = pairs[:n_pos]
        fc_pairs = pairs[n_pos:n_pos + n_fc]
        dec_pairs = pairs[n_pos + n_fc:]

        # pos encoder (+ shared activation already folded into the layer freq)
        s = xs_ref[...].astype(jnp.float32)        # (dim, tm)
        for w_ref, b_ref in pos_pairs:
            s = layer(s, w_ref, b_ref)

        # fc encoder
        tt = xt_ref[...].astype(jnp.float32)       # (1, tm)
        for w_ref, b_ref in fc_pairs:
            tt = layer(tt, w_ref, b_ref)

        # torch.cat((start, t), axis=1)  -> feature (sublane) concat here
        x = jnp.concatenate([s, tt], axis=0)       # (latent_dim, tm)

        # decoder
        for w_ref, b_ref in dec_pairs:
            x = layer(x, w_ref, b_ref)

        o_ref[...] = x.astype(o_ref.dtype)

    return kernel


def _choose_tile_b(batch, per_row_bytes):
    """Batch tile: biggest that fits the VMEM budget, >=2 grid steps for v7x."""
    if batch <= 256:
        return batch                               # single full block (always legal)
    tm = _VMEM_BUDGET // max(per_row_bytes, 1)
    tm = min(tm, _TM_CAP, batch)
    # keep >= 2 grid steps so both v7x TensorCores get work (no-op on v5e/v6e)
    half = max(128, (((batch + 1) // 2) // 128) * 128)
    tm = min(tm, half)
    tm = max(128, (tm // 128) * 128)
    return tm


def network2_forward(fused, start, t):
    """Fused forward: start (B, dim), t (B, 1) -> (B, dim)."""
    batch, dim = start.shape
    dtype = start.dtype
    itemsize = jnp.dtype(dtype).itemsize

    pos, fc, dec = fused["pos"], fused["fc"], fused["dec"]
    layers = pos + fc + dec
    n_pos, n_fc, n_dec = len(pos), len(fc), len(dec)
    dout_final = dec[-1][0].shape[0]

    # Lane-dense transposed layout: (features, batch).
    xs = start.T                                   # (dim, B)
    xt = t.T                                       # (1, B)

    douts = [w.shape[0] for (w, _) in layers]
    # f32 intermediates for every layer (conservatively assumed live) + I/O blocks
    per_row = 4 * (sum(douts) + (dim + 1)) + 2 * itemsize * (dim + 1 + dout_final)
    tm = _choose_tile_b(batch, per_row)
    grid_b = pl.cdiv(batch, tm)

    in_specs = [
        pl.BlockSpec((dim, tm), lambda i: (0, i)),     # start^T, tiled over batch
        pl.BlockSpec((1, tm), lambda i: (0, i)),       # t^T,     tiled over batch
    ]
    operands = [xs, xt]
    for (w_s, b_s) in layers:                          # resident params
        in_specs.append(pl.BlockSpec(w_s.shape, lambda i: (0, 0)))
        in_specs.append(pl.BlockSpec(b_s.shape, lambda i: (0, 0)))
        operands.append(w_s)
        operands.append(b_s)

    flops = 2 * batch * sum(w.shape[0] * w.shape[1] for (w, _) in layers)
    transcendentals = batch * sum(douts)
    param_bytes = sum(int(w.size + b.size) for (w, b) in layers) * itemsize
    bytes_accessed = itemsize * batch * (dim + 1 + dout_final) + param_bytes

    out_t = pl.pallas_call(
        _make_fused_kernel(n_pos, n_fc, n_dec),
        out_shape=jax.ShapeDtypeStruct((dout_final, batch), dtype),
        grid=(grid_b,),
        in_specs=in_specs,
        out_specs=pl.BlockSpec((dout_final, tm), lambda i: (0, i)),
        compiler_params=pltpu.CompilerParams(
            dimension_semantics=("parallel",)),
        cost_estimate=pl.CostEstimate(
            flops=flops,
            transcendentals=transcendentals,
            bytes_accessed=bytes_accessed),
    )(*operands)

    return out_t.T                                     # back to (B, dim)


# ---------------------------------------------------------------------------
# Parameters (matches the PyTorch init structure / std exactly).
# ---------------------------------------------------------------------------
def _init_linear(key, dim_in, dim_out, *, w0, c, is_first, dtype):
    w_std = (1.0 / dim_in) if is_first else (math.sqrt(c / dim_in) / w0)
    kw, kb = jax.random.split(key)
    w = jax.random.uniform(kw, (dim_out, dim_in), dtype=jnp.float32,
                           minval=-w_std, maxval=w_std).astype(dtype)
    b = jax.random.uniform(kb, (dim_out,), dtype=jnp.float32,
                           minval=-w_std, maxval=w_std).astype(dtype)
    return w, b


def init_network2(key, dim, num_encoder_layers, num_decoder_layers, latent_dim,
                  dtype=jnp.float32):
    w0_first, w1, c = 50.0, 1.0, 6.0
    ne, nd = num_encoder_layers, num_decoder_layers
    pos_latent_dim = int(latent_dim / 4 * 3)
    fc_latent_dim = int(latent_dim / 4)

    kit = iter(jax.random.split(key, 2 * ne + nd))

    def make_encoder(dim_in0, lat):
        layers = []
        for i in range(ne):
            if i == 0:
                din, dout = dim_in0, int(lat // 2 ** (ne - 1))
                w, b = _init_linear(next(kit), din, dout, w0=w0_first, c=c,
                                    is_first=True, dtype=dtype)
                freq = w0_first
            else:
                din = int(lat // 2 ** (ne - i))
                dout = int(lat // 2 ** (ne - i - 1))
                w, b = _init_linear(next(kit), din, dout, w0=w1, c=c,
                                    is_first=False, dtype=dtype)
                freq = w1
            layers.append([w, b, freq])
        # PyTorch strips the encoder's final Sine ([:-1]) and applies the shared
        # activation = Sine(w1) afterwards -> the final sine frequency is w1.
        layers[-1][2] = w1
        return [tuple(l) for l in layers]

    pos = make_encoder(dim, pos_latent_dim)
    fc = make_encoder(1, fc_latent_dim)

    dec = []
    for i in range(nd):
        if i == 0:
            din, dout, is_first, winit, freq = latent_dim, latent_dim, True, w0_first, w0_first
        elif i == nd - 1:
            din = int(latent_dim // 2 ** (nd - 2))
            dout, is_first, winit, freq = dim, False, w1, w1
        else:
            din = int(latent_dim // 2 ** (i - 1))
            dout = int(latent_dim // 2 ** i)
            is_first, winit, freq = False, w1, w1
        w, b = _init_linear(next(kit), din, dout, w0=winit, c=c,
                            is_first=is_first, dtype=dtype)
        dec.append((w, b, freq))

    return {"pos": pos, "fc": fc, "dec": dec}


def fuse_params(params):
    """Init-time constant folding: store (w0*W) as (N,K) and (w0*b) as (N,1)."""
    def fold(layers):
        out = []
        for (w, b, w0) in layers:
            dt = w.dtype
            w_s = (w0 * w.astype(jnp.float32)).astype(dt)
            b_s = (w0 * b.astype(jnp.float32)).astype(dt).reshape(-1, 1)
            out.append((w_s, b_s))
        return out
    return {k: fold(v) for k, v in params.items()}


# ---------------------------------------------------------------------------
# Pure-JAX reference (row-major, unfused) for correctness checking.
# ---------------------------------------------------------------------------
def network2_ref(params, start, t):
    hp = jax.lax.Precision.HIGHEST

    def apply(layers, x):
        for (w, b, w0) in layers:
            x = jnp.sin(w0 * (jnp.dot(x, w.T, precision=hp) + b))
        return x

    s = apply(params["pos"], start)
    tt = apply(params["fc"], t)
    x = jnp.concatenate([s, tt], axis=1)
    return apply(params["dec"], x)


# ---------------------------------------------------------------------------
if __name__ == "__main__":
    key = jax.random.PRNGKey(0)
    # Network2(dim=3, num_encoder_layers=2, num_decoder_layers=3, latent_dim=32)
    dim, num_encoder_layers, num_decoder_layers, latent_dim = 3, 2, 3, 32

    kp, ks, kt, ks2, kt2 = jax.random.split(key, 5)
    params = init_network2(kp, dim, num_encoder_layers, num_decoder_layers,
                           latent_dim, dtype=jnp.float32)
    fused = fuse_params(params)          # fold w0 into W, b once at init

    fwd = jax.jit(network2_forward)

    # Small demo batch (single full block).
    B = 8
    start = jax.random.normal(ks, (B, dim), dtype=jnp.float32)
    t = jax.random.uniform(kt, (B, 1), dtype=jnp.float32)
    y = fwd(fused, start, t)
    jax.block_until_ready(y)
    y_ref = network2_ref(params, start, t)
    assert y.shape == (B, dim) and y.dtype == start.dtype
    assert jnp.allclose(y, y_ref, atol=5e-3, rtol=5e-3), \
        float(jnp.max(jnp.abs(y - y_ref)))

    # Larger batch exercising the multi-step (tiled, 128-lane-aligned) grid path.
    B2 = 512
    start2 = jax.random.normal(ks2, (B2, dim), dtype=jnp.float32)
    t2 = jax.random.uniform(kt2, (B2, 1), dtype=jnp.float32)
    y2 = fwd(fused, start2, t2)
    jax.block_until_ready(y2)
    y2_ref = network2_ref(params, start2, t2)
    assert jnp.allclose(y2, y2_ref, atol=5e-3, rtol=5e-3), \
        float(jnp.max(jnp.abs(y2 - y2_ref)))

    print("KERNEL_OK")
</pallas_src>

<mosaic_0001>
module attributes {stable_mosaic.version = 11 : i64} {
  func.func @kernel(%arg0: i32, %arg1: memref<3x8xf32, #tpu.memory_space<vmem>>, %arg2: memref<1x8xf32, #tpu.memory_space<vmem>>, %arg3: memref<12x3xf32, #tpu.memory_space<vmem>>, %arg4: memref<12x1xf32, #tpu.memory_space<vmem>>, %arg5: memref<24x12xf32, #tpu.memory_space<vmem>>, %arg6: memref<24x1xf32, #tpu.memory_space<vmem>>, %arg7: memref<4x1xf32, #tpu.memory_space<vmem>>, %arg8: memref<4x1xf32, #tpu.memory_space<vmem>>, %arg9: memref<8x4xf32, #tpu.memory_space<vmem>>, %arg10: memref<8x1xf32, #tpu.memory_space<vmem>>, %arg11: memref<32x32xf32, #tpu.memory_space<vmem>>, %arg12: memref<32x1xf32, #tpu.memory_space<vmem>>, %arg13: memref<16x32xf32, #tpu.memory_space<vmem>>, %arg14: memref<16x1xf32, #tpu.memory_space<vmem>>, %arg15: memref<3x16xf32, #tpu.memory_space<vmem>>, %arg16: memref<3x1xf32, #tpu.memory_space<vmem>>, %arg17: memref<3x8xf32, #tpu.memory_space<vmem>>) attributes {dimension_semantics = [#tpu.dimension_semantics<parallel>], iteration_bounds = array<i64: 1>, scalar_prefetch = 0 : i64, scratch_operands = 0 : i64, tpu.core_type = #tpu.core_type<tc>, window_params = [{transform_indices = @transform_0, window_bounds = array<i64: 3, 8>}, {transform_indices = @transform_1, window_bounds = array<i64: 1, 8>}, {pipeline_mode = #tpu.pipeline_mode<synchronous>, transform_indices = @transform_2, window_bounds = array<i64: 12, 3>}, {pipeline_mode = #tpu.pipeline_mode<synchronous>, transform_indices = @transform_3, window_bounds = array<i64: 12, 1>}, {pipeline_mode = #tpu.pipeline_mode<synchronous>, transform_indices = @transform_4, window_bounds = array<i64: 24, 12>}, {pipeline_mode = #tpu.pipeline_mode<synchronous>, transform_indices = @transform_5, window_bounds = array<i64: 24, 1>}, {pipeline_mode = #tpu.pipeline_mode<synchronous>, transform_indices = @transform_6, window_bounds = array<i64: 4, 1>}, {pipeline_mode = #tpu.pipeline_mode<synchronous>, transform_indices = @transform_7, window_bounds = array<i64: 4, 1>}, {pipeline_mode = #tpu.pipeline_mode<synchronous>, transform_indices = @transform_8, window_bounds = array<i64: 8, 4>}, {pipeline_mode = #tpu.pipeline_mode<synchronous>, transform_indices = @transform_9, window_bounds = array<i64: 8, 1>}, {pipeline_mode = #tpu.pipeline_mode<synchronous>, transform_indices = @transform_10, window_bounds = array<i64: 32, 32>}, {pipeline_mode = #tpu.pipeline_mode<synchronous>, transform_indices = @transform_11, window_bounds = array<i64: 32, 1>}, {pipeline_mode = #tpu.pipeline_mode<synchronous>, transform_indices = @transform_12, window_bounds = array<i64: 16, 32>}, {pipeline_mode = #tpu.pipeline_mode<synchronous>, transform_indices = @transform_13, window_bounds = array<i64: 16, 1>}, {pipeline_mode = #tpu.pipeline_mode<synchronous>, transform_indices = @transform_14, window_bounds = array<i64: 3, 16>}, {pipeline_mode = #tpu.pipeline_mode<synchronous>, transform_indices = @transform_15, window_bounds = array<i64: 3, 1>}, {transform_indices = @transform_16, window_bounds = array<i64: 3, 8>}]} {
    %c0 = arith.constant 0 : index
    %c0_0 = arith.constant 0 : index
    %0 = vector.load %arg1[%c0, %c0_0] : memref<3x8xf32, #tpu.memory_space<vmem>>, vector<3x8xf32>
    %c0_1 = arith.constant 0 : index
    %c0_2 = arith.constant 0 : index
    %1 = vector.load %arg3[%c0_1, %c0_2] : memref<12x3xf32, #tpu.memory_space<vmem>>, vector<12x3xf32>
    %c0_3 = arith.constant 0 : index
    %c0_4 = arith.constant 0 : index
    %2 = vector.load %arg4[%c0_3, %c0_4] : memref<12x1xf32, #tpu.memory_space<vmem>>, vector<12x1xf32>
    %3 = vector.extract_strided_slice %1 {offsets = [0, 0], sizes = [12, 1], strides = [1, 1]} : vector<12x3xf32> to vector<12x1xf32>
    %4 = vector.extract_strided_slice %0 {offsets = [0, 0], sizes = [1, 8], strides = [1, 1]} : vector<3x8xf32> to vector<1x8xf32>
    %5 = vector.broadcast %3 : vector<12x1xf32> to vector<12x8xf32>
    %6 = vector.broadcast %4 : vector<1x8xf32> to vector<12x8xf32>
    %7 = arith.mulf %5, %6 : vector<12x8xf32>
    %8 = vector.extract_strided_slice %1 {offsets = [0, 1], sizes = [12, 1], strides = [1, 1]} : vector<12x3xf32> to vector<12x1xf32>
    %9 = vector.extract_strided_slice %0 {offsets = [1, 0], sizes = [1, 8], strides = [1, 1]} : vector<3x8xf32> to vector<1x8xf32>
    %10 = vector.broadcast %8 : vector<12x1xf32> to vector<12x8xf32>
    %11 = vector.broadcast %9 : vector<1x8xf32> to vector<12x8xf32>
    %12 = arith.mulf %10, %11 : vector<12x8xf32>
    %13 = arith.addf %7, %12 : vector<12x8xf32>
    %14 = vector.extract_strided_slice %1 {offsets = [0, 2], sizes = [12, 1], strides = [1, 1]} : vector<12x3xf32> to vector<12x1xf32>
    %15 = vector.extract_strided_slice %0 {offsets = [2, 0], sizes = [1, 8], strides = [1, 1]} : vector<3x8xf32> to vector<1x8xf32>
    %16 = vector.broadcast %14 : vector<12x1xf32> to vector<12x8xf32>
    %17 = vector.broadcast %15 : vector<1x8xf32> to vector<12x8xf32>
    %18 = arith.mulf %16, %17 : vector<12x8xf32>
    %19 = arith.addf %13, %18 : vector<12x8xf32>
    %20 = vector.broadcast %2 : vector<12x1xf32> to vector<12x8xf32>
    %21 = arith.addf %19, %20 : vector<12x8xf32>
    %22 = math.sin %21 : vector<12x8xf32>
    %c0_5 = arith.constant 0 : index
    %c0_6 = arith.constant 0 : index
    %23 = vector.load %arg5[%c0_5, %c0_6] : memref<24x12xf32, #tpu.memory_space<vmem>>, vector<24x12xf32>
    %c0_7 = arith.constant 0 : index
    %c0_8 = arith.constant 0 : index
    %24 = vector.load %arg6[%c0_7, %c0_8] : memref<24x1xf32, #tpu.memory_space<vmem>>, vector<24x1xf32>
    %cst = arith.constant dense<0.000000e+00> : vector<24x8xf32>
    %25 = tpu.matmul %23, %22, %cst {dimension_numbers = #tpu.dot_dimension_numbers<[1], [0], [0], [1], [0, 0, 1, 1], [], []>} : vector<24x12xf32>, vector<12x8xf32>, vector<24x8xf32> -> vector<24x8xf32>
    %26 = vector.broadcast %24 : vector<24x1xf32> to vector<24x8xf32>
    %27 = arith.addf %25, %26 : vector<24x8xf32>
    %28 = math.sin %27 : vector<24x8xf32>
    %c0_9 = arith.constant 0 : index
    %c0_10 = arith.constant 0 : index
    %29 = vector.load %arg2[%c0_9, %c0_10] : memref<1x8xf32, #tpu.memory_space<vmem>>, vector<1x8xf32>
    %c0_11 = arith.constant 0 : index
    %c0_12 = arith.constant 0 : index
    %30 = vector.load %arg7[%c0_11, %c0_12] : memref<4x1xf32, #tpu.memory_space<vmem>>, vector<4x1xf32>
    %c0_13 = arith.constant 0 : index
    %c0_14 = arith.constant 0 : index
    %31 = vector.load %arg8[%c0_13, %c0_14] : memref<4x1xf32, #tpu.memory_space<vmem>>, vector<4x1xf32>
    %32 = vector.broadcast %30 : vector<4x1xf32> to vector<4x8xf32>
    %33 = vector.broadcast %29 : vector<1x8xf32> to vector<4x8xf32>
    %34 = arith.mulf %32, %33 : vector<4x8xf32>
    %35 = vector.broadcast %31 : vector<4x1xf32> to vector<4x8xf32>
    %36 = arith.addf %34, %35 : vector<4x8xf32>
    %37 = math.sin %36 : vector<4x8xf32>
    %c0_15 = arith.constant 0 : index
    %c0_16 = arith.constant 0 : index
    %38 = vector.load %arg9[%c0_15, %c0_16] : memref<8x4xf32, #tpu.memory_space<vmem>>, vector<8x4xf32>
    %c0_17 = arith.constant 0 : index
    %c0_18 = arith.constant 0 : index
    %39 = vector.load %arg10[%c0_17, %c0_18] : memref<8x1xf32, #tpu.memory_space<vmem>>, vector<8x1xf32>
    %40 = vector.extract_strided_slice %38 {offsets = [0, 0], sizes = [8, 1], strides = [1, 1]} : vector<8x4xf32> to vector<8x1xf32>
    %41 = vector.extract_strided_slice %37 {offsets = [0, 0], sizes = [1, 8], strides = [1, 1]} : vector<4x8xf32> to vector<1x8xf32>
    %42 = vector.broadcast %40 : vector<8x1xf32> to vector<8x8xf32>
    %43 = vector.broadcast %41 : vector<1x8xf32> to vector<8x8xf32>
    %44 = arith.mulf %42, %43 : vector<8x8xf32>
    %45 = vector.extract_strided_slice %38 {offsets = [0, 1], sizes = [8, 1], strides = [1, 1]} : vector<8x4xf32> to vector<8x1xf32>
    %46 = vector.extract_strided_slice %37 {offsets = [1, 0], sizes = [1, 8], strides = [1, 1]} : vector<4x8xf32> to vector<1x8xf32>
    %47 = vector.broadcast %45 : vector<8x1xf32> to vector<8x8xf32>
    %48 = vector.broadcast %46 : vector<1x8xf32> to vector<8x8xf32>
    %49 = arith.mulf %47, %48 : vector<8x8xf32>
    %50 = arith.addf %44, %49 : vector<8x8xf32>
    %51 = vector.extract_strided_slice %38 {offsets = [0, 2], sizes = [8, 1], strides = [1, 1]} : vector<8x4xf32> to vector<8x1xf32>
    %52 = vector.extract_strided_slice %37 {offsets = [2, 0], sizes = [1, 8], strides = [1, 1]} : vector<4x8xf32> to vector<1x8xf32>
    %53 = vector.broadcast %51 : vector<8x1xf32> to vector<8x8xf32>
    %54 = vector.broadcast %52 : vector<1x8xf32> to vector<8x8xf32>
    %55 = arith.mulf %53, %54 : vector<8x8xf32>
    %56 = arith.addf %50, %55 : vector<8x8xf32>
    %57 = vector.extract_strided_slice %38 {offsets = [0, 3], sizes = [8, 1], strides = [1, 1]} : vector<8x4xf32> to vector<8x1xf32>
    %58 = vector.extract_strided_slice %37 {offsets = [3, 0], sizes = [1, 8], strides = [1, 1]} : vector<4x8xf32> to vector<1x8xf32>
    %59 = vector.broadcast %57 : vector<8x1xf32> to vector<8x8xf32>
    %60 = vector.broadcast %58 : vector<1x8xf32> to vector<8x8xf32>
    %61 = arith.mulf %59, %60 : vector<8x8xf32>
    %62 = arith.addf %56, %61 : vector<8x8xf32>
    %63 = vector.broadcast %39 : vector<8x1xf32> to vector<8x8xf32>
    %64 = arith.addf %62, %63 : vector<8x8xf32>
    %65 = math.sin %64 : vector<8x8xf32>
    %66 = tpu.concatenate %28, %65 in 0 : vector<24x8xf32>, vector<8x8xf32> -> vector<32x8xf32>
    %c0_19 = arith.constant 0 : index
    %c0_20 = arith.constant 0 : index
    %67 = vector.load %arg11[%c0_19, %c0_20] : memref<32x32xf32, #tpu.memory_space<vmem>>, vector<32x32xf32>
    %c0_21 = arith.constant 0 : index
    %c0_22 = arith.constant 0 : index
    %68 = vector.load %arg12[%c0_21, %c0_22] : memref<32x1xf32, #tpu.memory_space<vmem>>, vector<32x1xf32>
    %cst_23 = arith.constant dense<0.000000e+00> : vector<32x8xf32>
    %69 = tpu.matmul %67, %66, %cst_23 {dimension_numbers = #tpu.dot_dimension_numbers<[1], [0], [0], [1], [0, 0, 1, 1], [], []>} : vector<32x32xf32>, vector<32x8xf32>, vector<32x8xf32> -> vector<32x8xf32>
    %70 = vector.broadcast %68 : vector<32x1xf32> to vector<32x8xf32>
    %71 = arith.addf %69, %70 : vector<32x8xf32>
    %72 = math.sin %71 : vector<32x8xf32>
    %c0_24 = arith.constant 0 : index
    %c0_25 = arith.constant 0 : index
    %73 = vector.load %arg13[%c0_24, %c0_25] : memref<16x32xf32, #tpu.memory_space<vmem>>, vector<16x32xf32>
    %c0_26 = arith.constant 0 : index
    %c0_27 = arith.constant 0 : index
    %74 = vector.load %arg14[%c0_26, %c0_27] : memref<16x1xf32, #tpu.memory_space<vmem>>, vector<16x1xf32>
    %cst_28 = arith.constant dense<0.000000e+00> : vector<16x8xf32>
    %75 = tpu.matmul %73, %72, %cst_28 {dimension_numbers = #tpu.dot_dimension_numbers<[1], [0], [0], [1], [0, 0, 1, 1], [], []>} : vector<16x32xf32>, vector<32x8xf32>, vector<16x8xf32> -> vector<16x8xf32>
    %76 = vector.broadcast %74 : vector<16x1xf32> to vector<16x8xf32>
    %77 = arith.addf %75, %76 : vector<16x8xf32>
    %78 = math.sin %77 : vector<16x8xf32>
    %c0_29 = arith.constant 0 : index
    %c0_30 = arith.constant 0 : index
    %79 = vector.load %arg15[%c0_29, %c0_30] : memref<3x16xf32, #tpu.memory_space<vmem>>, vector<3x16xf32>
    %c0_31 = arith.constant 0 : index
    %c0_32 = arith.constant 0 : index
    %80 = vector.load %arg16[%c0_31, %c0_32] : memref<3x1xf32, #tpu.memory_space<vmem>>, vector<3x1xf32>
    %cst_33 = arith.constant dense<0.000000e+00> : vector<3x8xf32>
    %81 = tpu.matmul %79, %78, %cst_33 {dimension_numbers = #tpu.dot_dimension_numbers<[1], [0], [0], [1], [0, 0, 1, 1], [], []>} : vector<3x16xf32>, vector<16x8xf32>, vector<3x8xf32> -> vector<3x8xf32>
    %82 = vector.broadcast %80 : vector<3x1xf32> to vector<3x8xf32>
    %83 = arith.addf %81, %82 : vector<3x8xf32>
    %84 = math.sin %83 : vector<3x8xf32>
    %c0_34 = arith.constant 0 : index
    %c0_35 = arith.constant 0 : index
    %85 = vector.load %arg17[%c0_34, %c0_35] : memref<3x8xf32, #tpu.memory_space<vmem>>, vector<3x8xf32>
    tpu.vector_store %arg17[%c0_34, %c0_35], %84 {strides = array<i32>} : memref<3x8xf32, #tpu.memory_space<vmem>>, vector<3x8xf32>,
    return
  }
  func.func @transform_0(%arg0: i32) -> (i32, i32) {
    %c0_i32 = arith.constant 0 : i32
    %c0_i32_0 = arith.constant 0 : i32
    return %c0_i32, %arg0 : i32, i32
  }
  func.func @transform_1(%arg0: i32) -> (i32, i32) {
    %c0_i32 = arith.constant 0 : i32
    %c0_i32_0 = arith.constant 0 : i32
    return %c0_i32, %arg0 : i32, i32
  }
  func.func @transform_2(%arg0: i32) -> (i32, i32) {
    %c0_i32 = arith.constant 0 : i32
    %c0_i32_0 = arith.constant 0 : i32
    %c0_i32_1 = arith.constant 0 : i32
    return %c0_i32, %c0_i32_0 : i32, i32
  }
  func.func @transform_3(%arg0: i32) -> (i32, i32) {
    %c0_i32 = arith.constant 0 : i32
    %c0_i32_0 = arith.constant 0 : i32
    %c0_i32_1 = arith.constant 0 : i32
    return %c0_i32, %c0_i32_0 : i32, i32
  }
  func.func @transform_4(%arg0: i32) -> (i32, i32) {
    %c0_i32 = arith.constant 0 : i32
    %c0_i32_0 = arith.constant 0 : i32
    %c0_i32_1 = arith.constant 0 : i32
    return %c0_i32, %c0_i32_0 : i32, i32
  }
  func.func @transform_5(%arg0: i32) -> (i32, i32) {
    %c0_i32 = arith.constant 0 : i32
    %c0_i32_0 = arith.constant 0 : i32
    %c0_i32_1 = arith.constant 0 : i32
    return %c0_i32, %c0_i32_0 : i32, i32
  }
  func.func @transform_6(%arg0: i32) -> (i32, i32) {
    %c0_i32 = arith.constant 0 : i32
    %c0_i32_0 = arith.constant 0 : i32
    %c0_i32_1 = arith.constant 0 : i32
    return %c0_i32, %c0_i32_0 : i32, i32
  }
  func.func @transform_7(%arg0: i32) -> (i32, i32) {
    %c0_i32 = arith.constant 0 : i32
    %c0_i32_0 = arith.constant 0 : i32
    %c0_i32_1 = arith.constant 0 : i32
    return %c0_i32, %c0_i32_0 : i32, i32
  }
  func.func @transform_8(%arg0: i32) -> (i32, i32) {
    %c0_i32 = arith.constant 0 : i32
    %c0_i32_0 = arith.constant 0 : i32
    %c0_i32_1 = arith.constant 0 : i32
    return %c0_i32, %c0_i32_0 : i32, i32
  }
  func.func @transform_9(%arg0: i32) -> (i32, i32) {
    %c0_i32 = arith.constant 0 : i32
    %c0_i32_0 = arith.constant 0 : i32
    %c0_i32_1 = arith.constant 0 : i32
    return %c0_i32, %c0_i32_0 : i32, i32
  }
  func.func @transform_10(%arg0: i32) -> (i32, i32) {
    %c0_i32 = arith.constant 0 : i32
    %c0_i32_0 = arith.constant 0 : i32
    %c0_i32_1 = arith.constant 0 : i32
    return %c0_i32, %c0_i32_0 : i32, i32
  }
  func.func @transform_11(%arg0: i32) -> (i32, i32) {
    %c0_i32 = arith.constant 0 : i32
    %c0_i32_0 = arith.constant 0 : i32
    %c0_i32_1 = arith.constant 0 : i32
    return %c0_i32, %c0_i32_0 : i32, i32
  }
  func.func @transform_12(%arg0: i32) -> (i32, i32) {
    %c0_i32 = arith.constant 0 : i32
    %c0_i32_0 = arith.constant 0 : i32
    %c0_i32_1 = arith.constant 0 : i32
    return %c0_i32, %c0_i32_0 : i32, i32
  }
  func.func @transform_13(%arg0: i32) -> (i32, i32) {
    %c0_i32 = arith.constant 0 : i32
    %c0_i32_0 = arith.constant 0 : i32
    %c0_i32_1 = arith.constant 0 : i32
    return %c0_i32, %c0_i32_0 : i32, i32
  }
  func.func @transform_14(%arg0: i32) -> (i32, i32) {
    %c0_i32 = arith.constant 0 : i32
    %c0_i32_0 = arith.constant 0 : i32
    %c0_i32_1 = arith.constant 0 : i32
    return %c0_i32, %c0_i32_0 : i32, i32
  }
  func.func @transform_15(%arg0: i32) -> (i32, i32) {
    %c0_i32 = arith.constant 0 : i32
    %c0_i32_0 = arith.constant 0 : i32
    %c0_i32_1 = arith.constant 0 : i32
    return %c0_i32, %c0_i32_0 : i32, i32
  }
  func.func @transform_16(%arg0: i32) -> (i32, i32) {
    %c0_i32 = arith.constant 0 : i32
    %c0_i32_0 = arith.constant 0 : i32
    return %c0_i32, %arg0 : i32, i32
  }
}

</mosaic_0001>

<llo_original>
// kernel: network2_forward.1
$region0: #{network2_forward.1}
  #allocation0 [shape = 'u32[]', space=smem, size = 0x4, offset = 0x4, fixed_abs, tag = 'smem constant byte address 0x4 - core index']
  #allocation1 [shape = 'u32[144,128]{1,0:T(1,128)}', space=vmem, size = 0x12000, scoped, tag = 'internal scratch']
  %s0 = inlined_call_operand.vmem [shape: f32[3,8], index: 0, kind: input, shape index: {}]
  %s1 = inlined_call_operand.vmem [shape: f32[1,8], index: 1, kind: input, shape index: {}]
  %s2 = inlined_call_operand.vmem [shape: f32[12,3], index: 2, kind: input, shape index: {}]
  %s3 = inlined_call_operand.vmem [shape: f32[12,1], index: 3, kind: input, shape index: {}]
  %s4 = inlined_call_operand.vmem [shape: f32[24,12], index: 4, kind: input, shape index: {}]
  %s5 = inlined_call_operand.vmem [shape: f32[24,1], index: 5, kind: input, shape index: {}]
  %s6 = inlined_call_operand.vmem [shape: f32[4,1], index: 6, kind: input, shape index: {}]
  %s7 = inlined_call_operand.vmem [shape: f32[4,1], index: 7, kind: input, shape index: {}]
  %s8 = inlined_call_operand.vmem [shape: f32[8,4], index: 8, kind: input, shape index: {}]
  %s9 = inlined_call_operand.vmem [shape: f32[8,1], index: 9, kind: input, shape index: {}]
  %s10 = inlined_call_operand.vmem [shape: f32[32,32], index: 10, kind: input, shape index: {}]
  %s11 = inlined_call_operand.vmem [shape: f32[32,1], index: 11, kind: input, shape index: {}]
  %s12 = inlined_call_operand.vmem [shape: f32[16,32], index: 12, kind: input, shape index: {}]
  %s13 = inlined_call_operand.vmem [shape: f32[16,1], index: 13, kind: input, shape index: {}]
  %s14 = inlined_call_operand.vmem [shape: f32[3,16], index: 14, kind: input, shape index: {}]
  %s15 = inlined_call_operand.vmem [shape: f32[3,1], index: 15, kind: input, shape index: {}]
  %s16 = inlined_call_operand.hbm [shape: f32[3,8], index: 16, kind: output, shape index: {}]
  %s17 = sld [smem:[#allocation0]]
  $region74: #{network2_forward.1} parent=0
    _
  %s19 = ssub.s32 1, %s17
  %s20 = scalar_select 0, %s19, %s17
  $region1: #{network2_forward.1} parent=0
    #allocation2 [shape = 'u8[2048]{0}', space=vmem, size = 0x800, scoped, tag = 'output window, operand 0, single buffered']
    #allocation3 [shape = 's32[1]{0}', space=sflag, size = 0x4, scoped, tag = 'scoped memory for network2_forward.1']
    %21 = vsyncpa [#allocation3], 0
    // Predicated region
    $region2: #{network2_forward.1} parent=1 // pred_check
      _
    $region3: #{network2_forward.1} parent=1 // pred_check_branch
      %23 = sbr.rel (0) target = $region5
    $region4: #{network2_forward.1} parent=1 // pred_region
      _
    $region5: #{network2_forward.1} parent=1 // pred_fallthru
      _
    // Predicated region
    $region6: #{network2_forward.1} parent=1 // pred_check
      _
    $region7: #{network2_forward.1} parent=1 // pred_check_branch
      %25 = sbr.rel (0) target = $region9
    $region8: #{network2_forward.1} parent=1 // pred_region
      _
    $region9: #{network2_forward.1} parent=1 // pred_fallthru
      _
    // Predicated region
    $region10: #{network2_forward.1} parent=1 // pred_check
      _
    $region11: #{network2_forward.1} parent=1 // pred_check_branch
      %27 = sbr.rel (0) target = $region13
    $region12: #{network2_forward.1} parent=1 // pred_region
      _
    $region13: #{network2_forward.1} parent=1 // pred_fallthru
      _
    // Predicated region
    $region14: #{network2_forward.1} parent=1 // pred_check
      _
    $region15: #{network2_forward.1} parent=1 // pred_check_branch
      %29 = sbr.rel (0) target = $region17
    $region16: #{network2_forward.1} parent=1 // pred_region
      _
    $region17: #{network2_forward.1} parent=1 // pred_fallthru
      _
    // Predicated region
    $region18: #{network2_forward.1} parent=1 // pred_check
      _
    $region19: #{network2_forward.1} parent=1 // pred_check_branch
      %31 = sbr.rel (0) target = $region21
    $region20: #{network2_forward.1} parent=1 // pred_region
      _
    $region21: #{network2_forward.1} parent=1 // pred_fallthru
      _
    // Predicated region
    $region22: #{network2_forward.1} parent=1 // pred_check
      _
    $region23: #{network2_forward.1} parent=1 // pred_check_branch
      %33 = sbr.rel (0) target = $region25
    $region24: #{network2_forward.1} parent=1 // pred_region
      _
    $region25: #{network2_forward.1} parent=1 // pred_fallthru
      _
    // Predicated region
    $region26: #{network2_forward.1} parent=1 // pred_check
      _
    $region27: #{network2_forward.1} parent=1 // pred_check_branch
      %35 = sbr.rel (0) target = $region29
    $region28: #{network2_forward.1} parent=1 // pred_region
      _
    $region29: #{network2_forward.1} parent=1 // pred_fallthru
      _
    // Predicated region
    $region30: #{network2_forward.1} parent=1 // pred_check
      _
    $region31: #{network2_forward.1} parent=1 // pred_check_branch
      %37 = sbr.rel (0) target = $region33
    $region32: #{network2_forward.1} parent=1 // pred_region
      _
    $region33: #{network2_forward.1} parent=1 // pred_fallthru
      _
    // Predicated region
    $region34: #{network2_forward.1} parent=1 // pred_check
      _
    $region35: #{network2_forward.1} parent=1 // pred_check_branch
      %39 = sbr.rel (0) target = $region37
    $region36: #{network2_forward.1} parent=1 // pred_region
      _
    $region37: #{network2_forward.1} parent=1 // pred_fallthru
      _
    // Predicated region
    $region38: #{network2_forward.1} parent=1 // pred_check
      _
    $region39: #{network2_forward.1} parent=1 // pred_check_branch
      %41 = sbr.rel (0) target = $region41
    $region40: #{network2_forward.1} parent=1 // pred_region
      _
    $region41: #{network2_forward.1} parent=1 // pred_fallthru
      _
    // Predicated region
    $region42: #{network2_forward.1} parent=1 // pred_check
      _
    $region43: #{network2_forward.1} parent=1 // pred_check_branch
      %43 = sbr.rel (0) target = $region45
    $region44: #{network2_forward.1} parent=1 // pred_region
      _
    $region45: #{network2_forward.1} parent=1 // pred_fallthru
      _
    // Predicated region
    $region46: #{network2_forward.1} parent=1 // pred_check
      _
    $region47: #{network2_forward.1} parent=1 // pred_check_branch
      %45 = sbr.rel (0) target = $region49
    $region48: #{network2_forward.1} parent=1 // pred_region
      _
    $region49: #{network2_forward.1} parent=1 // pred_fallthru
      _
    // Predicated region
    $region50: #{network2_forward.1} parent=1 // pred_check
      _
    $region51: #{network2_forward.1} parent=1 // pred_check_branch
      %47 = sbr.rel (0) target = $region53
    $region52: #{network2_forward.1} parent=1 // pred_region
      _
    $region53: #{network2_forward.1} parent=1 // pred_fallthru
      _
    // Predicated region
    $region54: #{network2_forward.1} parent=1 // pred_check
      _
    $region55: #{network2_forward.1} parent=1 // pred_check_branch
      %49 = sbr.rel (0) target = $region57
    $region56: #{network2_forward.1} parent=1 // pred_region
      _
    $region57: #{network2_forward.1} parent=1 // pred_fallthru
      _
    // Predicated region
    $region58: #{network2_forward.1} parent=1 // pred_check
      _
    $region59: #{network2_forward.1} parent=1 // pred_check_branch
      %51 = sbr.rel (0) target = $region61
    $region60: #{network2_forward.1} parent=1 // pred_region
      _
    $region61: #{network2_forward.1} parent=1 // pred_fallthru
      _
    // Predicated region
    $region62: #{network2_forward.1} parent=1 // pred_check
      _
    $region63: #{network2_forward.1} parent=1 // pred_check_branch
      %53 = sbr.rel (0) target = $region65
    $region64: #{network2_forward.1} parent=1 // pred_region
      _
    $region65: #{network2_forward.1} parent=1 // pred_fallthru
      _
    %v54 = vld [vmem:[%s0] sm:$0x7]
    %v55 = vld [vmem:[%s2] sm:$0xff]
    %v56 = vld [vmem:[%s2 + $0x8] sm:$0xf]
    %v57 = vld [vmem:[%s3] sm:$0xff]
    %v58 = vld [vmem:[%s3 + $0x8] sm:$0xf]
    %60 = vset.pattern.permute.xlu0 0
    %61 = vperm.xlu0 %60, %v55
    %v62 = vpop.permute.xlu0 %61
    %65 = vset.pattern.permute.xlu0 0
    %66 = vperm.xlu0 %65, %v56
    %v67 = vpop.permute.xlu0 %66
    %v69 = vlaneseq
    %v70 = vshrl.u32 %v69, 7
    %v71 = vsub.s32 0, %v70
    %v72 = vrot.slane %v54, %v71
    %v73 = vmul.f32 %v62, %v72
    %v74 = vmul.f32 %v67, %v72
    %75 = vset.pattern.permute.xlu0 1
    %76 = vperm.xlu0 %75, %v55
    %v77 = vpop.permute.xlu0 %76
    %79 = vset.pattern.permute.xlu0 1
    %80 = vperm.xlu0 %79, %v56
    %v81 = vpop.permute.xlu0 %80
    %v83 = vlaneseq
    %v84 = vshrl.u32 %v83, 7
    %v85 = vsub.s32 1, %v84
    %v86 = vrot.slane %v54, %v85
    %v87 = vmul.f32 %v77, %v86
    %v88 = vmul.f32 %v81, %v86
    %v89 = vadd.f32 %v73, %v87
    %v90 = vadd.f32 %v74, %v88
    %91 = vset.pattern.permute.xlu0 2
    %92 = vperm.xlu0 %91, %v55
    %v93 = vpop.permute.xlu0 %92
    %95 = vset.pattern.permute.xlu0 2
    %96 = vperm.xlu0 %95, %v56
    %v97 = vpop.permute.xlu0 %96
    %v99 = vlaneseq
    %v100 = vshrl.u32 %v99, 7
    %v101 = vsub.s32 2, %v100
    %v102 = vrot.slane %v54, %v101
    %v103 = vmul.f32 %v93, %v102
    %v104 = vmul.f32 %v97, %v102
    %v105 = vadd.f32 %v89, %v103
    %v106 = vadd.f32 %v90, %v104
    %108 = vset.pattern.permute.xlu0 0
    %109 = vperm.xlu0 %108, %v57
    %v110 = vpop.permute.xlu0 %109
    %113 = vset.pattern.permute.xlu0 0
    %114 = vperm.xlu0 %113, %v58
    %v115 = vpop.permute.xlu0 %114
    %v117 = vadd.f32 %v105, %v110
    %v118 = vadd.f32 %v106, %v115
    %v119 = vand.u32 2147483647, %v117
    %vm120 = vcmp.le.f32.partialorder %v119, 0.7853982
    %vm121 = vcmp.lt.s32.totalorder %v117, 0
    %v122 = vand.u32 %v117, 2139095040
    %v123 = vshrl.u32 %v122, 23
    %v124 = vsub.s32 %v123, 127
    %v125 = vand.u32 2147483647, %v117
    %v126 = vand.u32 %v125, 8388607
    %v127 = vor.u32 %v126, 8388608
    %v128 = vsub.s32 0, %v127
    %v129 = vadd.s32 %v124, 1
    %vm130 = vcmp.gt.s32.totalorder %v129, 0
    %v131 = vsel %vm130, %v129, 0
    %v132 = vshrl.u32 %v131, 5
    %v133 = vand.u32 %v131, 31
    %v134 = vsub.s32 32, %v133
    %v135 = vshrl.u32 683565275, %v134
    %v136 = vshll.u32 683565275, %v133
    %v137 = vshrl.u32 2475754826, %v134
    %v138 = vor.u32 %v136, %v137
    %v139 = vshll.u32 2475754826, %v133
    %v140 = vshrl.u32 2131351028, %v134
    %v141 = vor.u32 %v139, %v140
    %v142 = vshll.u32 2131351028, %v133
    %v143 = vshrl.u32 2102212464, %v134
    %v144 = vor.u32 %v142, %v143
    %v145 = vshll.u32 2102212464, %v133
    %v146 = vshrl.u32 920167782, %v134
    %v147 = vor.u32 %v145, %v146
    %v148 = vshll.u32 920167782, %v133
    %v149 = vshrl.u32 1326507024, %v134
    %v150 = vor.u32 %v148, %v149
    %vm151 = vcmp.lt.s32.totalorder %v132, 1
    %vm152 = vcmp.lt.s32.totalorder %v132, 2
    %vm153 = vcmp.lt.s32.totalorder %v132, 3
    %vm154 = vcmp.lt.s32.totalorder %v132, 4
    %v155 = vsel %vm151, %v135, %v138
    %v156 = vsel %vm154, %v144, 2102212464
    %v157 = vsel %vm153, %v141, %v156
    %v158 = vsel %vm152, %v155, %v157
    %v159 = vsel %vm151, %v138, %v141
    %v160 = vsel %vm154, %v147, 920167782
    %v161 = vsel %vm153, %v144, %v160
    %v162 = vsel %vm152, %v159, %v161
    %v163 = vsel %vm151, %v141, %v144
    %v164 = vsel %vm154, %v150, 1326507024
    %v165 = vsel %vm153, %v147, %v164
    %v166 = vsel %vm152, %v163, %v165
    %v167 = vshll.u32 %v127, 8
    %v168 = vmul.u32.u64.compose %v167, %v166
    %v169 = vextract.low.u32 %v168
    %v170 = vextract.high.u32 %v168
    %v171 = vmul.u32.u64.compose %v167, %v162
    %v172 = vextract.low.u32 %v171
    %v173 = vextract.high.u32 %v171
    %v174 = vmul.u32 %v167, %v158
    %v175 = vadd.s32 %v170, %v172
    %vm176 = vc.u32 %v170, %v172
    %v177 = vadd.s32 %v173, 1
    %v178 = vsel %vm176, %v177, %v173
    %v179 = vadd.s32 %v174, %v178
    %v180 = vadd.s32 %v179, 536870912
    %v181 = vshrl.u32 %v180, 30
    %v182 = vshll.u32 %v181, 30
    %v183 = vsub.s32 %v179, %v182
    %vm184 = vcmp.lt.s32.totalorder %v183, 0
    %v185 = vsub.s32 0, %v183
    %v186 = vsel %vm184, %v185, %v183
    %v187 = vclz %v186
    %v188 = vsub.s32 %v187, 2
    %vm189 = vcmp.gt.s32.totalorder 0, %v188
    %v190 = vsel %vm189, 0, %v188
    %v191 = vsub.s32 32, %v190
    %v192 = vshll.u32 %v183, %v190
    %v193 = vshrl.u32 %v175, %v191
    %v194 = vor.u32 %v192, %v193
    %v195 = vsub.s32 4294967266, %v190
    %v196 = vadd.s32 %v195, 127
    %v197 = vshll.u32 %v196, 23
    %v198 = vor.u32 4788187, %v197
    %v199 = vand.u32 2147483647, %v198
    %v201 = vcvt.s32.f32 %v194
    %v202 = vmul.f32 %v201, %v199
    %v203 = vxor.u32 %v202, 2147483648
    %v204 = vsel %vm121, %v203, %v202
    %v205 = vsub.s32 4, %v181
    %v206 = vsel %vm121, %v205, %v181
    %v207 = vsel %vm120, %v117, %v204
    %v208 = vsel %vm120, 0, %v206
    %v209 = vcosq.f32.pop %v207
    %v210 = vsinq.f32.pop %v207
    %vm211 = vweird.f32 %v117
    %v212 = vadd.s32 %v208, 3
    %v213 = vand.u32 %v212, 3
    %vm214 = vcmp.lt.s32.totalorder %v213, 2
    %vm215 = vcmp.eq.s32.totalorder %v213, 0
    %v216 = vxor.u32 %v210, 2147483648
    %v217 = vsel %vm215, %v209, %v216
    %vm218 = vcmp.eq.s32.totalorder %v213, 2
    %v219 = vxor.u32 %v209, 2147483648
    %v220 = vsel %vm218, %v219, %v210
    %v221 = vsel %vm214, %v217, %v220
    %v222 = vsel %vm211, nan, %v221
    %v223 = vand.u32 2147483647, %v118
    %vm224 = vcmp.le.f32.partialorder %v223, 0.7853982
    %vm225 = vcmp.lt.s32.totalorder %v118, 0
    %v226 = vand.u32 %v118, 2139095040
    %v227 = vshrl.u32 %v226, 23
    %v228 = vsub.s32 %v227, 127
    %v229 = vand.u32 2147483647, %v118
    %v230 = vand.u32 %v229, 8388607
    %v231 = vor.u32 %v230, 8388608
    %v232 = vsub.s32 0, %v231
    %v233 = vadd.s32 %v228, 1
    %vm234 = vcmp.gt.s32.totalorder %v233, 0
    %v235 = vsel %vm234, %v233, 0
    %v236 = vshrl.u32 %v235, 5
    %v237 = vand.u32 %v235, 31
    %v238 = vsub.s32 32, %v237
    %v239 = vshrl.u32 683565275, %v238
    %v240 = vshll.u32 683565275, %v237
    %v241 = vshrl.u32 2475754826, %v238
    %v242 = vor.u32 %v240, %v241
    %v243 = vshll.u32 2475754826, %v237
    %v244 = vshrl.u32 2131351028, %v238
    %v245 = vor.u32 %v243, %v244
    %v246 = vshll.u32 2131351028, %v237
    %v247 = vshrl.u32 2102212464, %v238
    %v248 = vor.u32 %v246, %v247
    %v249 = vshll.u32 2102212464, %v237
    %v250 = vshrl.u32 920167782, %v238
    %v251 = vor.u32 %v249, %v250
    %v252 = vshll.u32 920167782, %v237
    %v253 = vshrl.u32 1326507024, %v238
    %v254 = vor.u32 %v252, %v253
    %vm255 = vcmp.lt.s32.totalorder %v236, 1
    %vm256 = vcmp.lt.s32.totalorder %v236, 2
    %vm257 = vcmp.lt.s32.totalorder %v236, 3
    %vm258 = vcmp.lt.s32.totalorder %v236, 4
    %v259 = vsel %vm255, %v239, %v242
    %v260 = vsel %vm258, %v248, 2102212464
    %v261 = vsel %vm257, %v245, %v260
    %v262 = vsel %vm256, %v259, %v261
    %v263 = vsel %vm255, %v242, %v245
    %v264 = vsel %vm258, %v251, 920167782
    %v265 = vsel %vm257, %v248, %v264
    %v266 = vsel %vm256, %v263, %v265
    %v267 = vsel %vm255, %v245, %v248
    %v268 = vsel %vm258, %v254, 1326507024
    %v269 = vsel %vm257, %v251, %v268
    %v270 = vsel %vm256, %v267, %v269
    %v271 = vshll.u32 %v231, 8
    %v272 = vmul.u32.u64.compose %v271, %v270
    %v273 = vextract.low.u32 %v272
    %v274 = vextract.high.u32 %v272
    %v275 = vmul.u32.u64.compose %v271, %v266
    %v276 = vextract.low.u32 %v275
    %v277 = vextract.high.u32 %v275
    %v278 = vmul.u32 %v271, %v262
    %v279 = vadd.s32 %v274, %v276
    %vm280 = vc.u32 %v274, %v276
    %v281 = vadd.s32 %v277, 1
    %v282 = vsel %vm280, %v281, %v277
    %v283 = vadd.s32 %v278, %v282
    %v284 = vadd.s32 %v283, 536870912
    %v285 = vshrl.u32 %v284, 30
    %v286 = vshll.u32 %v285, 30
    %v287 = vsub.s32 %v283, %v286
    %vm288 = vcmp.lt.s32.totalorder %v287, 0
    %v289 = vsub.s32 0, %v287
    %v290 = vsel %vm288, %v289, %v287
    %v291 = vclz %v290
    %v292 = vsub.s32 %v291, 2
    %vm293 = vcmp.gt.s32.totalorder 0, %v292
    %v294 = vsel %vm293, 0, %v292
    %v295 = vsub.s32 32, %v294
    %v296 = vshll.u32 %v287, %v294
    %v297 = vshrl.u32 %v279, %v295
    %v298 = vor.u32 %v296, %v297
    %v299 = vsub.s32 4294967266, %v294
    %v300 = vadd.s32 %v299, 127
    %v301 = vshll.u32 %v300, 23
    %v302 = vor.u32 4788187, %v301
    %v303 = vand.u32 2147483647, %v302
    %v305 = vcvt.s32.f32 %v298
    %v306 = vmul.f32 %v305, %v303
    %v307 = vxor.u32 %v306, 2147483648
    %v308 = vsel %vm225, %v307, %v306
    %v309 = vsub.s32 4, %v285
    %v310 = vsel %vm225, %v309, %v285
    %v311 = vsel %vm224, %v118, %v308
    %v312 = vsel %vm224, 0, %v310
    %v313 = vcosq.f32.pop %v311
    %v314 = vsinq.f32.pop %v311
    %vm315 = vweird.f32 %v118
    %v316 = vadd.s32 %v312, 3
    %v317 = vand.u32 %v316, 3
    %vm318 = vcmp.lt.s32.totalorder %v317, 2
    %vm319 = vcmp.eq.s32.totalorder %v317, 0
    %v320 = vxor.u32 %v314, 2147483648
    %v321 = vsel %vm319, %v313, %v320
    %vm322 = vcmp.eq.s32.totalorder %v317, 2
    %v323 = vxor.u32 %v313, 2147483648
    %v324 = vsel %vm322, %v323, %v314
    %v325 = vsel %vm318, %v321, %v324
    %v326 = vsel %vm315, nan, %v325
    %v327 = vld [vmem:[%s4] sm:$0xff]
    %v328 = vld [vmem:[%s4 + $0x8] sm:$0xff]
    %v329 = vld [vmem:[%s4 + $0x10] sm:$0xff]
    %v330 = vld [vmem:[%s5] sm:$0xff]
    %v331 = vld [vmem:[%s5 + $0x8] sm:$0xff]
    %v332 = vld [vmem:[%s5 + $0x10] sm:$0xff]
    %334 = vset.pattern.permute.xlu0 0
    %335 = vperm.xlu0 %334, %v330
    %v336 = vpop.permute.xlu0 %335
    %339 = vset.pattern.permute.xlu0 0
    %340 = vperm.xlu0 %339, %v331
    %v341 = vpop.permute.xlu0 %340
    %344 = vset.pattern.permute.xlu0 0
    %345 = vperm.xlu0 %344, %v332
    %v346 = vpop.permute.xlu0 %345
    %vm348 = vcmask 97280
    %v350 = vsel %vm348, %v327, 0
    %v353 = vsel %vm348, %v328, 0
    %v356 = vsel %vm348, %v329, 0
    %vm358 = vcmask 1043456
    %v360 = vsel %vm358, %v326, 0
    %362 = vmatprep.subr.mxu0 0.0
    %363 = vmatpush1.msra.mxu0 %v222
    %364 = vmatprep.subr.mxu0 0.0
    %365 = vmatpush1.msra.mxu0 %v360
    %366 = vmatprep.subr.mxu0 0.0
    %367 = vmatpush1.msra.mxu0 0.0
    %368 = vmatprep.subr.mxu0 0.0
    %369 = vmatpush1.msra.mxu0 0.0
    %370 = vmatprep.subr.mxu0 0.0
    %371 = vmatpush1.msra.mxu0 0.0
    %372 = vmatprep.subr.mxu0 0.0
    %373 = vmatpush1.msra.mxu0 0.0
    %374 = vmatprep.subr.mxu0 0.0
    %375 = vmatpush1.msra.mxu0 0.0
    %376 = vmatprep.subr.mxu0 0.0
    %377 = vmatpush1.msra.mxu0 0.0
    %378 = vmatprep.subr.mxu0 0.0
    %379 = vmatpush1.msra.mxu0 0.0
    %380 = vmatprep.subr.mxu0 0.0
    %381 = vmatpush1.msra.mxu0 0.0
    %382 = vmatprep.subr.mxu0 0.0
    %383 = vmatpush1.msra.mxu0 0.0
    %384 = vmatprep.subr.mxu0 0.0
    %385 = vmatpush1.msra.mxu0 0.0
    %386 = vmatprep.subr.mxu0 0.0
    %387 = vmatpush1.msra.mxu0 0.0
    %388 = vmatprep.subr.mxu0 0.0
    %389 = vmatpush1.msra.mxu0 0.0
    %390 = vmatprep.subr.mxu0 0.0
    %391 = vmatpush1.msra.mxu0 0.0
    %392 = vmatprep.subr.mxu0 0.0
    %393 = vmatpush1.msra.mxu0 0.0
    %394 = vmatprep.subr.mxu0 0.0
    %395 = vmatpush1.msra.mxu0 0.0
    %396 = vmatprep.subr.mxu0 0.0
    %397 = vmatpush1.msra.mxu0 0.0
    %398 = vmatprep.subr.mxu0 0.0
    %399 = vmatpush1.msra.mxu0 0.0
    %400 = vmatprep.subr.mxu0 0.0
    %401 = vmatpush1.msra.mxu0 0.0
    %402 = vmatprep.subr.mxu0 0.0
    %403 = vmatpush1.msra.mxu0 0.0
    %404 = vmatprep.subr.mxu0 0.0
    %405 = vmatpush1.msra.mxu0 0.0
    %406 = vmatprep.subr.mxu0 0.0
    %407 = vmatpush1.msra.mxu0 0.0
    %408 = vmatprep.subr.mxu0 0.0
    %409 = vmatpush1.msra.mxu0 0.0
    %410 = vmatprep.subr.mxu0 0.0
    %411 = vmatpush1.msra.mxu0 0.0
    %412 = vmatprep.subr.mxu0 0.0
    %413 = vmatpush1.msra.mxu0 0.0
    %414 = vmatprep.subr.mxu0 0.0
    %415 = vmatpush1.msra.mxu0 0.0
    %416 = vmatprep.subr.mxu0 0.0
    %417 = vmatpush1.msra.mxu0 0.0
    %418 = vmatprep.subr.mxu0 0.0
    %419 = vmatpush1.msra.mxu0 0.0
    %420 = vmatprep.subr.mxu0 0.0
    %421 = vmatpush1.msra.mxu0 0.0
    %422 = vmatprep.subr.mxu0 0.0
    %423 = vmatpush1.msra.mxu0 0.0
    %424 = vmatprep.subr.mxu0 0.0
    %425 = vmatpush1.msra.mxu0 0.0
    %426 = vmatprep.mubr.f32.mxu0 0.0
    %427 = vmatmul.mubr.f32.gmra.mrb[0].mxu0 %v350
    %v428 = vpop.f32.mrb[0].mxu0
    %v429 = vadd.f32 %v336, %v428
    %v430 = vpop.f32.mrb[0].mxu0
    %431 = vmatprep.mubr.f32.mxu0 0.0
    %432 = vmatmul.mubr.f32.gmra.mrb[0].mxu0 %v353
    %v433 = vpop.f32.mrb[0].mxu0
    %v434 = vadd.f32 %v341, %v433
    %v435 = vpop.f32.mrb[0].mxu0
    %436 = vmatprep.mubr.f32.mxu0 0.0
    %437 = vmatmul.mubr.f32.gmra.mrb[0].mxu0 %v356
    %v438 = vpop.f32.mrb[0].mxu0
    %v439 = vadd.f32 %v346, %v438
    %v440 = vpop.f32.mrb[0].mxu0
    %441 = vdwg.mxu0
    %v442 = vand.u32 2147483647, %v429
    %vm443 = vcmp.le.f32.partialorder %v442, 0.7853982
    %vm444 = vcmp.lt.s32.totalorder %v429, 0
    %v445 = vand.u32 %v429, 2139095040
    %v446 = vshrl.u32 %v445, 23
    %v447 = vsub.s32 %v446, 127
    %v448 = vand.u32 2147483647, %v429
    %v449 = vand.u32 %v448, 8388607
    %v450 = vor.u32 %v449, 8388608
    %v451 = vsub.s32 0, %v450
    %v452 = vadd.s32 %v447, 1
    %vm453 = vcmp.gt.s32.totalorder %v452, 0
    %v454 = vsel %vm453, %v452, 0
    %v455 = vshrl.u32 %v454, 5
    %v456 = vand.u32 %v454, 31
    %v457 = vsub.s32 32, %v456
    %v458 = vshrl.u32 683565275, %v457
    %v459 = vshll.u32 683565275, %v456
    %v460 = vshrl.u32 2475754826, %v457
    %v461 = vor.u32 %v459, %v460
    %v462 = vshll.u32 2475754826, %v456
    %v463 = vshrl.u32 2131351028, %v457
    %v464 = vor.u32 %v462, %v463
    %v465 = vshll.u32 2131351028, %v456
    %v466 = vshrl.u32 2102212464, %v457
    %v467 = vor.u32 %v465, %v466
    %v468 = vshll.u32 2102212464, %v456
    %v469 = vshrl.u32 920167782, %v457
    %v470 = vor.u32 %v468, %v469
    %v471 = vshll.u32 920167782, %v456
    %v472 = vshrl.u32 1326507024, %v457
    %v473 = vor.u32 %v471, %v472
    %vm474 = vcmp.lt.s32.totalorder %v455, 1
    %vm475 = vcmp.lt.s32.totalorder %v455, 2
    %vm476 = vcmp.lt.s32.totalorder %v455, 3
    %vm477 = vcmp.lt.s32.totalorder %v455, 4
    %v478 = vsel %vm474, %v458, %v461
    %v479 = vsel %vm477, %v467, 2102212464
    %v480 = vsel %vm476, %v464, %v479
    %v481 = vsel %vm475, %v478, %v480
    %v482 = vsel %vm474, %v461, %v464
    %v483 = vsel %vm477, %v470, 920167782
    %v484 = vsel %vm476, %v467, %v483
    %v485 = vsel %vm475, %v482, %v484
    %v486 = vsel %vm474, %v464, %v467
    %v487 = vsel %vm477, %v473, 1326507024
    %v488 = vsel %vm476, %v470, %v487
    %v489 = vsel %vm475, %v486, %v488
    %v490 = vshll.u32 %v450, 8
    %v491 = vmul.u32.u64.compose %v490, %v489
    %v492 = vextract.low.u32 %v491
    %v493 = vextract.high.u32 %v491
    %v494 = vmul.u32.u64.compose %v490, %v485
    %v495 = vextract.low.u32 %v494
    %v496 = vextract.high.u32 %v494
    %v497 = vmul.u32 %v490, %v481
    %v498 = vadd.s32 %v493, %v495
    %vm499 = vc.u32 %v493, %v495
    %v500 = vadd.s32 %v496, 1
    %v501 = vsel %vm499, %v500, %v496
    %v502 = vadd.s32 %v497, %v501
    %v503 = vadd.s32 %v502, 536870912
    %v504 = vshrl.u32 %v503, 30
    %v505 = vshll.u32 %v504, 30
    %v506 = vsub.s32 %v502, %v505
    %vm507 = vcmp.lt.s32.totalorder %v506, 0
    %v508 = vsub.s32 0, %v506
    %v509 = vsel %vm507, %v508, %v506
    %v510 = vclz %v509
    %v511 = vsub.s32 %v510, 2
    %vm512 = vcmp.gt.s32.totalorder 0, %v511
    %v513 = vsel %vm512, 0, %v511
    %v514 = vsub.s32 32, %v513
    %v515 = vshll.u32 %v506, %v513
    %v516 = vshrl.u32 %v498, %v514
    %v517 = vor.u32 %v515, %v516
    %v518 = vsub.s32 4294967266, %v513
    %v519 = vadd.s32 %v518, 127
    %v520 = vshll.u32 %v519, 23
    %v521 = vor.u32 4788187, %v520
    %v522 = vand.u32 2147483647, %v521
    %v524 = vcvt.s32.f32 %v517
    %v525 = vmul.f32 %v524, %v522
    %v526 = vxor.u32 %v525, 2147483648
    %v527 = vsel %vm444, %v526, %v525
    %v528 = vsub.s32 4, %v504
    %v529 = vsel %vm444, %v528, %v504
    %v530 = vsel %vm443, %v429, %v527
    %v531 = vsel %vm443, 0, %v529
    %v532 = vcosq.f32.pop %v530
    %v533 = vsinq.f32.pop %v530
    %vm534 = vweird.f32 %v429
    %v535 = vadd.s32 %v531, 3
    %v536 = vand.u32 %v535, 3
    %vm537 = vcmp.lt.s32.totalorder %v536, 2
    %vm538 = vcmp.eq.s32.totalorder %v536, 0
    %v539 = vxor.u32 %v533, 2147483648
    %v540 = vsel %vm538, %v532, %v539
    %vm541 = vcmp.eq.s32.totalorder %v536, 2
    %v542 = vxor.u32 %v532, 2147483648
    %v543 = vsel %vm541, %v542, %v533
    %v544 = vsel %vm537, %v540, %v543
    %v545 = vsel %vm534, nan, %v544
    %v546 = vand.u32 2147483647, %v434
    %vm547 = vcmp.le.f32.partialorder %v546, 0.7853982
    %vm548 = vcmp.lt.s32.totalorder %v434, 0
    %v549 = vand.u32 %v434, 2139095040
    %v550 = vshrl.u32 %v549, 23
    %v551 = vsub.s32 %v550, 127
    %v552 = vand.u32 2147483647, %v434
    %v553 = vand.u32 %v552, 8388607
    %v554 = vor.u32 %v553, 8388608
    %v555 = vsub.s32 0, %v554
    %v556 = vadd.s32 %v551, 1
    %vm557 = vcmp.gt.s32.totalorder %v556, 0
    %v558 = vsel %vm557, %v556, 0
    %v559 = vshrl.u32 %v558, 5
    %v560 = vand.u32 %v558, 31
    %v561 = vsub.s32 32, %v560
    %v562 = vshrl.u32 683565275, %v561
    %v563 = vshll.u32 683565275, %v560
    %v564 = vshrl.u32 2475754826, %v561
    %v565 = vor.u32 %v563, %v564
    %v566 = vshll.u32 2475754826, %v560
    %v567 = vshrl.u32 2131351028, %v561
    %v568 = vor.u32 %v566, %v567
    %v569 = vshll.u32 2131351028, %v560
    %v570 = vshrl.u32 2102212464, %v561
    %v571 = vor.u32 %v569, %v570
    %v572 = vshll.u32 2102212464, %v560
    %v573 = vshrl.u32 920167782, %v561
    %v574 = vor.u32 %v572, %v573
    %v575 = vshll.u32 920167782, %v560
    %v576 = vshrl.u32 1326507024, %v561
    %v577 = vor.u32 %v575, %v576
    %vm578 = vcmp.lt.s32.totalorder %v559, 1
    %vm579 = vcmp.lt.s32.totalorder %v559, 2
    %vm580 = vcmp.lt.s32.totalorder %v559, 3
    %vm581 = vcmp.lt.s32.totalorder %v559, 4
    %v582 = vsel %vm578, %v562, %v565
    %v583 = vsel %vm581, %v571, 2102212464
    %v584 = vsel %vm580, %v568, %v583
    %v585 = vsel %vm579, %v582, %v584
    %v586 = vsel %vm578, %v565, %v568
    %v587 = vsel %vm581, %v574, 920167782
    %v588 = vsel %vm580, %v571, %v587
    %v589 = vsel %vm579, %v586, %v588
    %v590 = vsel %vm578, %v568, %v571
    %v591 = vsel %vm581, %v577, 1326507024
    %v592 = vsel %vm580, %v574, %v591
    %v593 = vsel %vm579, %v590, %v592
    %v594 = vshll.u32 %v554, 8
    %v595 = vmul.u32.u64.compose %v594, %v593
    %v596 = vextract.low.u32 %v595
    %v597 = vextract.high.u32 %v595
    %v598 = vmul.u32.u64.compose %v594, %v589
    %v599 = vextract.low.u32 %v598
    %v600 = vextract.high.u32 %v598
    %v601 = vmul.u32 %v594, %v585
    %v602 = vadd.s32 %v597, %v599
    %vm603 = vc.u32 %v597, %v599
    %v604 = vadd.s32 %v600, 1
    %v605 = vsel %vm603, %v604, %v600
    %v606 = vadd.s32 %v601, %v605
    %v607 = vadd.s32 %v606, 536870912
    %v608 = vshrl.u32 %v607, 30
    %v609 = vshll.u32 %v608, 30
    %v610 = vsub.s32 %v606, %v609
    %vm611 = vcmp.lt.s32.totalorder %v610, 0
    %v612 = vsub.s32 0, %v610
    %v613 = vsel %vm611, %v612, %v610
    %v614 = vclz %v613
    %v615 = vsub.s32 %v614, 2
    %vm616 = vcmp.gt.s32.totalorder 0, %v615
    %v617 = vsel %vm616, 0, %v615
    %v618 = vsub.s32 32, %v617
    %v619 = vshll.u32 %v610, %v617
    %v620 = vshrl.u32 %v602, %v618
    %v621 = vor.u32 %v619, %v620
    %v622 = vsub.s32 4294967266, %v617
    %v623 = vadd.s32 %v622, 127
    %v624 = vshll.u32 %v623, 23
    %v625 = vor.u32 4788187, %v624
    %v626 = vand.u32 2147483647, %v625
    %v628 = vcvt.s32.f32 %v621
    %v629 = vmul.f32 %v628, %v626
    %v630 = vxor.u32 %v629, 2147483648
    %v631 = vsel %vm548, %v630, %v629
    %v632 = vsub.s32 4, %v608
    %v633 = vsel %vm548, %v632, %v608
    %v634 = vsel %vm547, %v434, %v631
    %v635 = vsel %vm547, 0, %v633
    %v636 = vcosq.f32.pop %v634
    %v637 = vsinq.f32.pop %v634
    %vm638 = vweird.f32 %v434
    %v639 = vadd.s32 %v635, 3
    %v640 = vand.u32 %v639, 3
    %vm641 = vcmp.lt.s32.totalorder %v640, 2
    %vm642 = vcmp.eq.s32.totalorder %v640, 0
    %v643 = vxor.u32 %v637, 2147483648
    %v644 = vsel %vm642, %v636, %v643
    %vm645 = vcmp.eq.s32.totalorder %v640, 2
    %v646 = vxor.u32 %v636, 2147483648
    %v647 = vsel %vm645, %v646, %v637
    %v648 = vsel %vm641, %v644, %v647
    %v649 = vsel %vm638, nan, %v648
    %v650 = vand.u32 2147483647, %v439
    %vm651 = vcmp.le.f32.partialorder %v650, 0.7853982
    %vm652 = vcmp.lt.s32.totalorder %v439, 0
    %v653 = vand.u32 %v439, 2139095040
    %v654 = vshrl.u32 %v653, 23
    %v655 = vsub.s32 %v654, 127
    %v656 = vand.u32 2147483647, %v439
    %v657 = vand.u32 %v656, 8388607
    %v658 = vor.u32 %v657, 8388608
    %v659 = vsub.s32 0, %v658
    %v660 = vadd.s32 %v655, 1
    %vm661 = vcmp.gt.s32.totalorder %v660, 0
    %v662 = vsel %vm661, %v660, 0
    %v663 = vshrl.u32 %v662, 5
    %v664 = vand.u32 %v662, 31
    %v665 = vsub.s32 32, %v664
    %v666 = vshrl.u32 683565275, %v665
    %v667 = vshll.u32 683565275, %v664
    %v668 = vshrl.u32 2475754826, %v665
    %v669 = vor.u32 %v667, %v668
    %v670 = vshll.u32 2475754826, %v664
    %v671 = vshrl.u32 2131351028, %v665
    %v672 = vor.u32 %v670, %v671
    %v673 = vshll.u32 2131351028, %v664
    %v674 = vshrl.u32 2102212464, %v665
    %v675 = vor.u32 %v673, %v674
    %v676 = vshll.u32 2102212464, %v664
    %v677 = vshrl.u32 920167782, %v665
    %v678 = vor.u32 %v676, %v677
    %v679 = vshll.u32 920167782, %v664
    %v680 = vshrl.u32 1326507024, %v665
    %v681 = vor.u32 %v679, %v680
    %vm682 = vcmp.lt.s32.totalorder %v663, 1
    %vm683 = vcmp.lt.s32.totalorder %v663, 2
    %vm684 = vcmp.lt.s32.totalorder %v663, 3
    %vm685 = vcmp.lt.s32.totalorder %v663, 4
    %v686 = vsel %vm682, %v666, %v669
    %v687 = vsel %vm685, %v675, 2102212464
    %v688 = vsel %vm684, %v672, %v687
    %v689 = vsel %vm683, %v686, %v688
    %v690 = vsel %vm682, %v669, %v672
    %v691 = vsel %vm685, %v678, 920167782
    %v692 = vsel %vm684, %v675, %v691
    %v693 = vsel %vm683, %v690, %v692
    %v694 = vsel %vm682, %v672, %v675
    %v695 = vsel %vm685, %v681, 1326507024
    %v696 = vsel %vm684, %v678, %v695
    %v697 = vsel %vm683, %v694, %v696
    %v698 = vshll.u32 %v658, 8
    %v699 = vmul.u32.u64.compose %v698, %v697
    %v700 = vextract.low.u32 %v699
    %v701 = vextract.high.u32 %v699
    %v702 = vmul.u32.u64.compose %v698, %v693
    %v703 = vextract.low.u32 %v702
    %v704 = vextract.high.u32 %v702
    %v705 = vmul.u32 %v698, %v689
    %v706 = vadd.s32 %v701, %v703
    %vm707 = vc.u32 %v701, %v703
    %v708 = vadd.s32 %v704, 1
    %v709 = vsel %vm707, %v708, %v704
    %v710 = vadd.s32 %v705, %v709
    %v711 = vadd.s32 %v710, 536870912
    %v712 = vshrl.u32 %v711, 30
    %v713 = vshll.u32 %v712, 30
    %v714 = vsub.s32 %v710, %v713
    %vm715 = vcmp.lt.s32.totalorder %v714, 0
    %v716 = vsub.s32 0, %v714
    %v717 = vsel %vm715, %v716, %v714
    %v718 = vclz %v717
    %v719 = vsub.s32 %v718, 2
    %vm720 = vcmp.gt.s32.totalorder 0, %v719
    %v721 = vsel %vm720, 0, %v719
    %v722 = vsub.s32 32, %v721
    %v723 = vshll.u32 %v714, %v721
    %v724 = vshrl.u32 %v706, %v722
    %v725 = vor.u32 %v723, %v724
    %v726 = vsub.s32 4294967266, %v721
    %v727 = vadd.s32 %v726, 127
    %v728 = vshll.u32 %v727, 23
    %v729 = vor.u32 4788187, %v728
    %v730 = vand.u32 2147483647, %v729
    %v732 = vcvt.s32.f32 %v725
    %v733 = vmul.f32 %v732, %v730
    %v734 = vxor.u32 %v733, 2147483648
    %v735 = vsel %vm652, %v734, %v733
    %v736 = vsub.s32 4, %v712
    %v737 = vsel %vm652, %v736, %v712
    %v738 = vsel %vm651, %v439, %v735
    %v739 = vsel %vm651, 0, %v737
    %v740 = vcosq.f32.pop %v738
    %v741 = vsinq.f32.pop %v738
    %vm742 = vweird.f32 %v439
    %v743 = vadd.s32 %v739, 3
    %v744 = vand.u32 %v743, 3
    %vm745 = vcmp.lt.s32.totalorder %v744, 2
    %vm746 = vcmp.eq.s32.totalorder %v744, 0
    %v747 = vxor.u32 %v741, 2147483648
    %v748 = vsel %vm746, %v740, %v747
    %vm749 = vcmp.eq.s32.totalorder %v744, 2
    %v750 = vxor.u32 %v740, 2147483648
    %v751 = vsel %vm749, %v750, %v741
    %v752 = vsel %vm745, %v748, %v751
    %v753 = vsel %vm742, nan, %v752
    %v754 = vld [vmem:[%s1] sm:$0x1]
    %v755 = vld [vmem:[%s6] sm:$0xf]
    %v756 = vld [vmem:[%s7] sm:$0xf]
    %758 = vset.pattern.permute.xlu0 0
    %759 = vperm.xlu0 %758, %v755
    %v760 = vpop.permute.xlu0 %759
    %v763 = vlaneseq
    %v764 = vshrl.u32 %v763, 7
    %v765 = vsub.s32 0, %v764
    %v766 = vrot.slane %v754, %v765
    %v768 = vmul.f32 %v760, %v766
    %770 = vset.pattern.permute.xlu0 0
    %771 = vperm.xlu0 %770, %v756
    %v772 = vpop.permute.xlu0 %771
    %v774 = vadd.f32 %v768, %v772
    %v775 = vand.u32 2147483647, %v774
    %vm776 = vcmp.le.f32.partialorder %v775, 0.7853982
    %vm777 = vcmp.lt.s32.totalorder %v774, 0
    %v778 = vand.u32 %v774, 2139095040
    %v779 = vshrl.u32 %v778, 23
    %v780 = vsub.s32 %v779, 127
    %v781 = vand.u32 2147483647, %v774
    %v782 = vand.u32 %v781, 8388607
    %v783 = vor.u32 %v782, 8388608
    %v784 = vsub.s32 0, %v783
    %v785 = vadd.s32 %v780, 1
    %vm786 = vcmp.gt.s32.totalorder %v785, 0
    %v787 = vsel %vm786, %v785, 0
    %v788 = vshrl.u32 %v787, 5
    %v789 = vand.u32 %v787, 31
    %v790 = vsub.s32 32, %v789
    %v791 = vshrl.u32 683565275, %v790
    %v792 = vshll.u32 683565275, %v789
    %v793 = vshrl.u32 2475754826, %v790
    %v794 = vor.u32 %v792, %v793
    %v795 = vshll.u32 2475754826, %v789
    %v796 = vshrl.u32 2131351028, %v790
    %v797 = vor.u32 %v795, %v796
    %v798 = vshll.u32 2131351028, %v789
    %v799 = vshrl.u32 2102212464, %v790
    %v800 = vor.u32 %v798, %v799
    %v801 = vshll.u32 2102212464, %v789
    %v802 = vshrl.u32 920167782, %v790
    %v803 = vor.u32 %v801, %v802
    %v804 = vshll.u32 920167782, %v789
    %v805 = vshrl.u32 1326507024, %v790
    %v806 = vor.u32 %v804, %v805
    %vm807 = vcmp.lt.s32.totalorder %v788, 1
    %vm808 = vcmp.lt.s32.totalorder %v788, 2
    %vm809 = vcmp.lt.s32.totalorder %v788, 3
    %vm810 = vcmp.lt.s32.totalorder %v788, 4
    %v811 = vsel %vm807, %v791, %v794
    %v812 = vsel %vm810, %v800, 2102212464
    %v813 = vsel %vm809, %v797, %v812
    %v814 = vsel %vm808, %v811, %v813
    %v815 = vsel %vm807, %v794, %v797
    %v816 = vsel %vm810, %v803, 920167782
    %v817 = vsel %vm809, %v800, %v816
    %v818 = vsel %vm808, %v815, %v817
    %v819 = vsel %vm807, %v797, %v800
    %v820 = vsel %vm810, %v806, 1326507024
    %v821 = vsel %vm809, %v803, %v820
    %v822 = vsel %vm808, %v819, %v821
    %v823 = vshll.u32 %v783, 8
    %v824 = vmul.u32.u64.compose %v823, %v822
    %v825 = vextract.low.u32 %v824
    %v826 = vextract.high.u32 %v824
    %v827 = vmul.u32.u64.compose %v823, %v818
    %v828 = vextract.low.u32 %v827
    %v829 = vextract.high.u32 %v827
    %v830 = vmul.u32 %v823, %v814
    %v831 = vadd.s32 %v826, %v828
    %vm832 = vc.u32 %v826, %v828
    %v833 = vadd.s32 %v829, 1
    %v834 = vsel %vm832, %v833, %v829
    %v835 = vadd.s32 %v830, %v834
    %v836 = vadd.s32 %v835, 536870912
    %v837 = vshrl.u32 %v836, 30
    %v838 = vshll.u32 %v837, 30
    %v839 = vsub.s32 %v835, %v838
    %vm840 = vcmp.lt.s32.totalorder %v839, 0
    %v841 = vsub.s32 0, %v839
    %v842 = vsel %vm840, %v841, %v839
    %v843 = vclz %v842
    %v844 = vsub.s32 %v843, 2
    %vm845 = vcmp.gt.s32.totalorder 0, %v844
    %v846 = vsel %vm845, 0, %v844
    %v847 = vsub.s32 32, %v846
    %v848 = vshll.u32 %v839, %v846
    %v849 = vshrl.u32 %v831, %v847
    %v850 = vor.u32 %v848, %v849
    %v851 = vsub.s32 4294967266, %v846
    %v852 = vadd.s32 %v851, 127
    %v853 = vshll.u32 %v852, 23
    %v854 = vor.u32 4788187, %v853
    %v855 = vand.u32 2147483647, %v854
    %v857 = vcvt.s32.f32 %v850
    %v858 = vmul.f32 %v857, %v855
    %v859 = vxor.u32 %v858, 2147483648
    %v860 = vsel %vm777, %v859, %v858
    %v861 = vsub.s32 4, %v837
    %v862 = vsel %vm777, %v861, %v837
    %v863 = vsel %vm776, %v774, %v860
    %v864 = vsel %vm776, 0, %v862
    %v865 = vcosq.f32.pop %v863
    %v866 = vsinq.f32.pop %v863
    %vm867 = vweird.f32 %v774
    %v868 = vadd.s32 %v864, 3
    %v869 = vand.u32 %v868, 3
    %vm870 = vcmp.lt.s32.totalorder %v869, 2
    %vm871 = vcmp.eq.s32.totalorder %v869, 0
    %v872 = vxor.u32 %v866, 2147483648
    %v873 = vsel %vm871, %v865, %v872
    %vm874 = vcmp.eq.s32.totalorder %v869, 2
    %v875 = vxor.u32 %v865, 2147483648
    %v876 = vsel %vm874, %v875, %v866
    %v877 = vsel %vm870, %v873, %v876
    %v878 = vsel %vm867, nan, %v877
    %v879 = vld [vmem:[%s8] sm:$0xff]
    %v880 = vld [vmem:[%s9] sm:$0xff]
    %882 = vset.pattern.permute.xlu0 0
    %883 = vperm.xlu0 %882, %v879
    %v884 = vpop.permute.xlu0 %883
    %v886 = vlaneseq
    %v887 = vshrl.u32 %v886, 7
    %v888 = vsub.s32 0, %v887
    %v889 = vrot.slane %v878, %v888
    %v890 = vmul.f32 %v884, %v889
    %891 = vset.pattern.permute.xlu0 1
    %892 = vperm.xlu0 %891, %v879
    %v893 = vpop.permute.xlu0 %892
    %v895 = vlaneseq
    %v896 = vshrl.u32 %v895, 7
    %v897 = vsub.s32 1, %v896
    %v898 = vrot.slane %v878, %v897
    %v899 = vmul.f32 %v893, %v898
    %v900 = vadd.f32 %v890, %v899
    %901 = vset.pattern.permute.xlu0 2
    %902 = vperm.xlu0 %901, %v879
    %v903 = vpop.permute.xlu0 %902
    %v905 = vlaneseq
    %v906 = vshrl.u32 %v905, 7
    %v907 = vsub.s32 2, %v906
    %v908 = vrot.slane %v878, %v907
    %v909 = vmul.f32 %v903, %v908
    %v910 = vadd.f32 %v900, %v909
    %911 = vset.pattern.permute.xlu0 3
    %912 = vperm.xlu0 %911, %v879
    %v913 = vpop.permute.xlu0 %912
    %v915 = vlaneseq
    %v916 = vshrl.u32 %v915, 7
    %v917 = vsub.s32 3, %v916
    %v918 = vrot.slane %v878, %v917
    %v919 = vmul.f32 %v913, %v918
    %v920 = vadd.f32 %v910, %v919
    %922 = vset.pattern.permute.xlu0 0
    %923 = vperm.xlu0 %922, %v880
    %v924 = vpop.permute.xlu0 %923
    %v926 = vadd.f32 %v920, %v924
    %v927 = vand.u32 2147483647, %v926
    %vm928 = vcmp.le.f32.partialorder %v927, 0.7853982
    %vm929 = vcmp.lt.s32.totalorder %v926, 0
    %v930 = vand.u32 %v926, 2139095040
    %v931 = vshrl.u32 %v930, 23
    %v932 = vsub.s32 %v931, 127
    %v933 = vand.u32 2147483647, %v926
    %v934 = vand.u32 %v933, 8388607
    %v935 = vor.u32 %v934, 8388608
    %v936 = vsub.s32 0, %v935
    %v937 = vadd.s32 %v932, 1
    %vm938 = vcmp.gt.s32.totalorder %v937, 0
    %v939 = vsel %vm938, %v937, 0
    %v940 = vshrl.u32 %v939, 5
    %v941 = vand.u32 %v939, 31
    %v942 = vsub.s32 32, %v941
    %v943 = vshrl.u32 683565275, %v942
    %v944 = vshll.u32 683565275, %v941
    %v945 = vshrl.u32 2475754826, %v942
    %v946 = vor.u32 %v944, %v945
    %v947 = vshll.u32 2475754826, %v941
    %v948 = vshrl.u32 2131351028, %v942
    %v949 = vor.u32 %v947, %v948
    %v950 = vshll.u32 2131351028, %v941
    %v951 = vshrl.u32 2102212464, %v942
    %v952 = vor.u32 %v950, %v951
    %v953 = vshll.u32 2102212464, %v941
    %v954 = vshrl.u32 920167782, %v942
    %v955 = vor.u32 %v953, %v954
    %v956 = vshll.u32 920167782, %v941
    %v957 = vshrl.u32 1326507024, %v942
    %v958 = vor.u32 %v956, %v957
    %vm959 = vcmp.lt.s32.totalorder %v940, 1
    %vm960 = vcmp.lt.s32.totalorder %v940, 2
    %vm961 = vcmp.lt.s32.totalorder %v940, 3
    %vm962 = vcmp.lt.s32.totalorder %v940, 4
    %v963 = vsel %vm959, %v943, %v946
    %v964 = vsel %vm962, %v952, 2102212464
    %v965 = vsel %vm961, %v949, %v964
    %v966 = vsel %vm960, %v963, %v965
    %v967 = vsel %vm959, %v946, %v949
    %v968 = vsel %vm962, %v955, 920167782
    %v969 = vsel %vm961, %v952, %v968
    %v970 = vsel %vm960, %v967, %v969
    %v971 = vsel %vm959, %v949, %v952
    %v972 = vsel %vm962, %v958, 1326507024
    %v973 = vsel %vm961, %v955, %v972
    %v974 = vsel %vm960, %v971, %v973
    %v975 = vshll.u32 %v935, 8
    %v976 = vmul.u32.u64.compose %v975, %v974
    %v977 = vextract.low.u32 %v976
    %v978 = vextract.high.u32 %v976
    %v979 = vmul.u32.u64.compose %v975, %v970
    %v980 = vextract.low.u32 %v979
    %v981 = vextract.high.u32 %v979
    %v982 = vmul.u32 %v975, %v966
    %v983 = vadd.s32 %v978, %v980
    %vm984 = vc.u32 %v978, %v980
    %v985 = vadd.s32 %v981, 1
    %v986 = vsel %vm984, %v985, %v981
    %v987 = vadd.s32 %v982, %v986
    %v988 = vadd.s32 %v987, 536870912
    %v989 = vshrl.u32 %v988, 30
    %v990 = vshll.u32 %v989, 30
    %v991 = vsub.s32 %v987, %v990
    %vm992 = vcmp.lt.s32.totalorder %v991, 0
    %v993 = vsub.s32 0, %v991
    %v994 = vsel %vm992, %v993, %v991
    %v995 = vclz %v994
    %v996 = vsub.s32 %v995, 2
    %vm997 = vcmp.gt.s32.totalorder 0, %v996
    %v998 = vsel %vm997, 0, %v996
    %v999 = vsub.s32 32, %v998
    %v1000 = vshll.u32 %v991, %v998
    %v1001 = vshrl.u32 %v983, %v999
    %v1002 = vor.u32 %v1000, %v1001
    %v1003 = vsub.s32 4294967266, %v998
    %v1004 = vadd.s32 %v1003, 127
    %v1005 = vshll.u32 %v1004, 23
    %v1006 = vor.u32 4788187, %v1005
    %v1007 = vand.u32 2147483647, %v1006
    %v1009 = vcvt.s32.f32 %v1002
    %v1010 = vmul.f32 %v1009, %v1007
    %v1011 = vxor.u32 %v1010, 2147483648
    %v1012 = vsel %vm929, %v1011, %v1010
    %v1013 = vsub.s32 4, %v989
    %v1014 = vsel %vm929, %v1013, %v989
    %v1015 = vsel %vm928, %v926, %v1012
    %v1016 = vsel %vm928, 0, %v1014
    %v1017 = vcosq.f32.pop %v1015
    %v1018 = vsinq.f32.pop %v1015
    %vm1019 = vweird.f32 %v926
    %v1020 = vadd.s32 %v1016, 3
    %v1021 = vand.u32 %v1020, 3
    %vm1022 = vcmp.lt.s32.totalorder %v1021, 2
    %vm1023 = vcmp.eq.s32.totalorder %v1021, 0
    %v1024 = vxor.u32 %v1018, 2147483648
    %v1025 = vsel %vm1023, %v1017, %v1024
    %vm1026 = vcmp.eq.s32.totalorder %v1021, 2
    %v1027 = vxor.u32 %v1017, 2147483648
    %v1028 = vsel %vm1026, %v1027, %v1018
    %v1029 = vsel %vm1022, %v1025, %v1028
    %v1030 = vsel %vm1019, nan, %v1029
    %v1031 = vld [vmem:[%s10] sm:$0xff]
    %v1032 = vld [vmem:[%s10 + $0x8] sm:$0xff]
    %v1033 = vld [vmem:[%s10 + $0x10] sm:$0xff]
    %v1034 = vld [vmem:[%s10 + $0x18] sm:$0xff]
    %v1035 = vld [vmem:[%s11] sm:$0xff]
    %v1036 = vld [vmem:[%s11 + $0x8] sm:$0xff]
    %v1037 = vld [vmem:[%s11 + $0x10] sm:$0xff]
    %v1038 = vld [vmem:[%s11 + $0x18] sm:$0xff]
    %1040 = vset.pattern.permute.xlu0 0
    %1041 = vperm.xlu0 %1040, %v1035
    %v1042 = vpop.permute.xlu0 %1041
    %1045 = vset.pattern.permute.xlu0 0
    %1046 = vperm.xlu0 %1045, %v1036
    %v1047 = vpop.permute.xlu0 %1046
    %1050 = vset.pattern.permute.xlu0 0
    %1051 = vperm.xlu0 %1050, %v1037
    %v1052 = vpop.permute.xlu0 %1051
    %1055 = vset.pattern.permute.xlu0 0
    %1056 = vperm.xlu0 %1055, %v1038
    %v1057 = vpop.permute.xlu0 %1056
    %vm1059 = vcmask 261120
    %v1061 = vsel %vm1059, %v1031, 0
    %v1064 = vsel %vm1059, %v1032, 0
    %v1067 = vsel %vm1059, %v1033, 0
    %v1070 = vsel %vm1059, %v1034, 0
    %1072 = vmatprep.subr.mxu0 0.0
    %1073 = vmatpush1.msra.mxu0 %v545
    %1074 = vmatprep.subr.mxu0 0.0
    %1075 = vmatpush1.msra.mxu0 %v649
    %1076 = vmatprep.subr.mxu0 0.0
    %1077 = vmatpush1.msra.mxu0 %v753
    %1078 = vmatprep.subr.mxu0 0.0
    %1079 = vmatpush1.msra.mxu0 %v1030
    %1080 = vmatprep.subr.mxu0 0.0
    %1081 = vmatpush1.msra.mxu0 0.0
    %1082 = vmatprep.subr.mxu0 0.0
    %1083 = vmatpush1.msra.mxu0 0.0
    %1084 = vmatprep.subr.mxu0 0.0
    %1085 = vmatpush1.msra.mxu0 0.0
    %1086 = vmatprep.subr.mxu0 0.0
    %1087 = vmatpush1.msra.mxu0 0.0
    %1088 = vmatprep.subr.mxu0 0.0
    %1089 = vmatpush1.msra.mxu0 0.0
    %1090 = vmatprep.subr.mxu0 0.0
    %1091 = vmatpush1.msra.mxu0 0.0
    %1092 = vmatprep.subr.mxu0 0.0
    %1093 = vmatpush1.msra.mxu0 0.0
    %1094 = vmatprep.subr.mxu0 0.0
    %1095 = vmatpush1.msra.mxu0 0.0
    %1096 = vmatprep.subr.mxu0 0.0
    %1097 = vmatpush1.msra.mxu0 0.0
    %1098 = vmatprep.subr.mxu0 0.0
    %1099 = vmatpush1.msra.mxu0 0.0
    %1100 = vmatprep.subr.mxu0 0.0
    %1101 = vmatpush1.msra.mxu0 0.0
    %1102 = vmatprep.subr.mxu0 0.0
    %1103 = vmatpush1.msra.mxu0 0.0
    %1104 = vmatprep.subr.mxu0 0.0
    %1105 = vmatpush1.msra.mxu0 0.0
    %1106 = vmatprep.subr.mxu0 0.0
    %1107 = vmatpush1.msra.mxu0 0.0
    %1108 = vmatprep.subr.mxu0 0.0
    %1109 = vmatpush1.msra.mxu0 0.0
    %1110 = vmatprep.subr.mxu0 0.0
    %1111 = vmatpush1.msra.mxu0 0.0
    %1112 = vmatprep.subr.mxu0 0.0
    %1113 = vmatpush1.msra.mxu0 0.0
    %1114 = vmatprep.subr.mxu0 0.0
    %1115 = vmatpush1.msra.mxu0 0.0
    %1116 = vmatprep.subr.mxu0 0.0
    %1117 = vmatpush1.msra.mxu0 0.0
    %1118 = vmatprep.subr.mxu0 0.0
    %1119 = vmatpush1.msra.mxu0 0.0
    %1120 = vmatprep.subr.mxu0 0.0
    %1121 = vmatpush1.msra.mxu0 0.0
    %1122 = vmatprep.subr.mxu0 0.0
    %1123 = vmatpush1.msra.mxu0 0.0
    %1124 = vmatprep.subr.mxu0 0.0
    %1125 = vmatpush1.msra.mxu0 0.0
    %1126 = vmatprep.subr.mxu0 0.0
    %1127 = vmatpush1.msra.mxu0 0.0
    %1128 = vmatprep.subr.mxu0 0.0
    %1129 = vmatpush1.msra.mxu0 0.0
    %1130 = vmatprep.subr.mxu0 0.0
    %1131 = vmatpush1.msra.mxu0 0.0
    %1132 = vmatprep.subr.mxu0 0.0
    %1133 = vmatpush1.msra.mxu0 0.0
    %1134 = vmatprep.subr.mxu0 0.0
    %1135 = vmatpush1.msra.mxu0 0.0
    %1136 = vmatprep.mubr.f32.mxu0 0.0
    %1137 = vmatmul.mubr.f32.gmra.mrb[0].mxu0 %v1061
    %v1138 = vpop.f32.mrb[0].mxu0
    %v1139 = vadd.f32 %v1042, %v1138
    %v1140 = vpop.f32.mrb[0].mxu0
    %1141 = vmatprep.mubr.f32.mxu0 0.0
    %1142 = vmatmul.mubr.f32.gmra.mrb[0].mxu0 %v1064
    %v1143 = vpop.f32.mrb[0].mxu0
    %v1144 = vadd.f32 %v1047, %v1143
    %v1145 = vpop.f32.mrb[0].mxu0
    %1146 = vmatprep.mubr.f32.mxu0 0.0
    %1147 = vmatmul.mubr.f32.gmra.mrb[0].mxu0 %v1067
    %v1148 = vpop.f32.mrb[0].mxu0
    %v1149 = vadd.f32 %v1052, %v1148
    %v1150 = vpop.f32.mrb[0].mxu0
    %1151 = vmatprep.mubr.f32.mxu0 0.0
    %1152 = vmatmul.mubr.f32.gmra.mrb[0].mxu0 %v1070
    %v1153 = vpop.f32.mrb[0].mxu0
    %v1154 = vadd.f32 %v1057, %v1153
    %v1155 = vpop.f32.mrb[0].mxu0
    %1156 = vdwg.mxu0
    %v1157 = vand.u32 2147483647, %v1139
    %vm1158 = vcmp.le.f32.partialorder %v1157, 0.7853982
    %vm1159 = vcmp.lt.s32.totalorder %v1139, 0
    %v1160 = vand.u32 %v1139, 2139095040
    %v1161 = vshrl.u32 %v1160, 23
    %v1162 = vsub.s32 %v1161, 127
    %v1163 = vand.u32 2147483647, %v1139
    %v1164 = vand.u32 %v1163, 8388607
    %v1165 = vor.u32 %v1164, 8388608
    %v1166 = vsub.s32 0, %v1165
    %v1167 = vadd.s32 %v1162, 1
    %vm1168 = vcmp.gt.s32.totalorder %v1167, 0
    %v1169 = vsel %vm1168, %v1167, 0
    %v1170 = vshrl.u32 %v1169, 5
    %v1171 = vand.u32 %v1169, 31
    %v1172 = vsub.s32 32, %v1171
    %v1173 = vshrl.u32 683565275, %v1172
    %v1174 = vshll.u32 683565275, %v1171
    %v1175 = vshrl.u32 2475754826, %v1172
    %v1176 = vor.u32 %v1174, %v1175
    %v1177 = vshll.u32 2475754826, %v1171
    %v1178 = vshrl.u32 2131351028, %v1172
    %v1179 = vor.u32 %v1177, %v1178
    %v1180 = vshll.u32 2131351028, %v1171
    %v1181 = vshrl.u32 2102212464, %v1172
    %v1182 = vor.u32 %v1180, %v1181
    %v1183 = vshll.u32 2102212464, %v1171
    %v1184 = vshrl.u32 920167782, %v1172
    %v1185 = vor.u32 %v1183, %v1184
    %v1186 = vshll.u32 920167782, %v1171
    %v1187 = vshrl.u32 1326507024, %v1172
    %v1188 = vor.u32 %v1186, %v1187
    %vm1189 = vcmp.lt.s32.totalorder %v1170, 1
    %vm1190 = vcmp.lt.s32.totalorder %v1170, 2
    %vm1191 = vcmp.lt.s32.totalorder %v1170, 3
    %vm1192 = vcmp.lt.s32.totalorder %v1170, 4
    %v1193 = vsel %vm1189, %v1173, %v1176
    %v1194 = vsel %vm1192, %v1182, 2102212464
    %v1195 = vsel %vm1191, %v1179, %v1194
    %v1196 = vsel %vm1190, %v1193, %v1195
    %v1197 = vsel %vm1189, %v1176, %v1179
    %v1198 = vsel %vm1192, %v1185, 920167782
    %v1199 = vsel %vm1191, %v1182, %v1198
    %v1200 = vsel %vm1190, %v1197, %v1199
    %v1201 = vsel %vm1189, %v1179, %v1182
    %v1202 = vsel %vm1192, %v1188, 1326507024
    %v1203 = vsel %vm1191, %v1185, %v1202
    %v1204 = vsel %vm1190, %v1201, %v1203
    %v1205 = vshll.u32 %v1165, 8
    %v1206 = vmul.u32.u64.compose %v1205, %v1204
    %v1207 = vextract.low.u32 %v1206
    %v1208 = vextract.high.u32 %v1206
    %v1209 = vmul.u32.u64.compose %v1205, %v1200
    %v1210 = vextract.low.u32 %v1209
    %v1211 = vextract.high.u32 %v1209
    %v1212 = vmul.u32 %v1205, %v1196
    %v1213 = vadd.s32 %v1208, %v1210
    %vm1214 = vc.u32 %v1208, %v1210
    %v1215 = vadd.s32 %v1211, 1
    %v1216 = vsel %vm1214, %v1215, %v1211
    %v1217 = vadd.s32 %v1212, %v1216
    %v1218 = vadd.s32 %v1217, 536870912
    %v1219 = vshrl.u32 %v1218, 30
    %v1220 = vshll.u32 %v1219, 30
    %v1221 = vsub.s32 %v1217, %v1220
    %vm1222 = vcmp.lt.s32.totalorder %v1221, 0
    %v1223 = vsub.s32 0, %v1221
    %v1224 = vsel %vm1222, %v1223, %v1221
    %v1225 = vclz %v1224
    %v1226 = vsub.s32 %v1225, 2
    %vm1227 = vcmp.gt.s32.totalorder 0, %v1226
    %v1228 = vsel %vm1227, 0, %v1226
    %v1229 = vsub.s32 32, %v1228
    %v1230 = vshll.u32 %v1221, %v1228
    %v1231 = vshrl.u32 %v1213, %v1229
    %v1232 = vor.u32 %v1230, %v1231
    %v1233 = vsub.s32 4294967266, %v1228
    %v1234 = vadd.s32 %v1233, 127
    %v1235 = vshll.u32 %v1234, 23
    %v1236 = vor.u32 4788187, %v1235
    %v1237 = vand.u32 2147483647, %v1236
    %v1239 = vcvt.s32.f32 %v1232
    %v1240 = vmul.f32 %v1239, %v1237
    %v1241 = vxor.u32 %v1240, 2147483648
    %v1242 = vsel %vm1159, %v1241, %v1240
    %v1243 = vsub.s32 4, %v1219
    %v1244 = vsel %vm1159, %v1243, %v1219
    %v1245 = vsel %vm1158, %v1139, %v1242
    %v1246 = vsel %vm1158, 0, %v1244
    %v1247 = vcosq.f32.pop %v1245
    %v1248 = vsinq.f32.pop %v1245
    %vm1249 = vweird.f32 %v1139
    %v1250 = vadd.s32 %v1246, 3
    %v1251 = vand.u32 %v1250, 3
    %vm1252 = vcmp.lt.s32.totalorder %v1251, 2
    %vm1253 = vcmp.eq.s32.totalorder %v1251, 0
    %v1254 = vxor.u32 %v1248, 2147483648
    %v1255 = vsel %vm1253, %v1247, %v1254
    %vm1256 = vcmp.eq.s32.totalorder %v1251, 2
    %v1257 = vxor.u32 %v1247, 2147483648
    %v1258 = vsel %vm1256, %v1257, %v1248
    %v1259 = vsel %vm1252, %v1255, %v1258
    %v1260 = vsel %vm1249, nan, %v1259
    %v1261 = vand.u32 2147483647, %v1144
    %vm1262 = vcmp.le.f32.partialorder %v1261, 0.7853982
    %vm1263 = vcmp.lt.s32.totalorder %v1144, 0
    %v1264 = vand.u32 %v1144, 2139095040
    %v1265 = vshrl.u32 %v1264, 23
    %v1266 = vsub.s32 %v1265, 127
    %v1267 = vand.u32 2147483647, %v1144
    %v1268 = vand.u32 %v1267, 8388607
    %v1269 = vor.u32 %v1268, 8388608
    %v1270 = vsub.s32 0, %v1269
    %v1271 = vadd.s32 %v1266, 1
    %vm1272 = vcmp.gt.s32.totalorder %v1271, 0
    %v1273 = vsel %vm1272, %v1271, 0
    %v1274 = vshrl.u32 %v1273, 5
    %v1275 = vand.u32 %v1273, 31
    %v1276 = vsub.s32 32, %v1275
    %v1277 = vshrl.u32 683565275, %v1276
    %v1278 = vshll.u32 683565275, %v1275
    %v1279 = vshrl.u32 2475754826, %v1276
    %v1280 = vor.u32 %v1278, %v1279
    %v1281 = vshll.u32 2475754826, %v1275
    %v1282 = vshrl.u32 2131351028, %v1276
    %v1283 = vor.u32 %v1281, %v1282
    %v1284 = vshll.u32 2131351028, %v1275
    %v1285 = vshrl.u32 2102212464, %v1276
    %v1286 = vor.u32 %v1284, %v1285
    %v1287 = vshll.u32 2102212464, %v1275
    %v1288 = vshrl.u32 920167782, %v1276
    %v1289 = vor.u32 %v1287, %v1288
    %v1290 = vshll.u32 920167782, %v1275
    %v1291 = vshrl.u32 1326507024, %v1276
    %v1292 = vor.u32 %v1290, %v1291
    %vm1293 = vcmp.lt.s32.totalorder %v1274, 1
    %vm1294 = vcmp.lt.s32.totalorder %v1274, 2
    %vm1295 = vcmp.lt.s32.totalorder %v1274, 3
    %vm1296 = vcmp.lt.s32.totalorder %v1274, 4
    %v1297 = vsel %vm1293, %v1277, %v1280
    %v1298 = vsel %vm1296, %v1286, 2102212464
    %v1299 = vsel %vm1295, %v1283, %v1298
    %v1300 = vsel %vm1294, %v1297, %v1299
    %v1301 = vsel %vm1293, %v1280, %v1283
    %v1302 = vsel %vm1296, %v1289, 920167782
    %v1303 = vsel %vm1295, %v1286, %v1302
    %v1304 = vsel %vm1294, %v1301, %v1303
    %v1305 = vsel %vm1293, %v1283, %v1286
    %v1306 = vsel %vm1296, %v1292, 1326507024
    %v1307 = vsel %vm1295, %v1289, %v1306
    %v1308 = vsel %vm1294, %v1305, %v1307
    %v1309 = vshll.u32 %v1269, 8
    %v1310 = vmul.u32.u64.compose %v1309, %v1308
    %v1311 = vextract.low.u32 %v1310
    %v1312 = vextract.high.u32 %v1310
    %v1313 = vmul.u32.u64.compose %v1309, %v1304
    %v1314 = vextract.low.u32 %v1313
    %v1315 = vextract.high.u32 %v1313
    %v1316 = vmul.u32 %v1309, %v1300
    %v1317 = vadd.s32 %v1312, %v1314
    %vm1318 = vc.u32 %v1312, %v1314
    %v1319 = vadd.s32 %v1315, 1
    %v1320 = vsel %vm1318, %v1319, %v1315
    %v1321 = vadd.s32 %v1316, %v1320
    %v1322 = vadd.s32 %v1321, 536870912
    %v1323 = vshrl.u32 %v1322, 30
    %v1324 = vshll.u32 %v1323, 30
    %v1325 = vsub.s32 %v1321, %v1324
    %vm1326 = vcmp.lt.s32.totalorder %v1325, 0
    %v1327 = vsub.s32 0, %v1325
    %v1328 = vsel %vm1326, %v1327, %v1325
    %v1329 = vclz %v1328
    %v1330 = vsub.s32 %v1329, 2
    %vm1331 = vcmp.gt.s32.totalorder 0, %v1330
    %v1332 = vsel %vm1331, 0, %v1330
    %v1333 = vsub.s32 32, %v1332
    %v1334 = vshll.u32 %v1325, %v1332
    %v1335 = vshrl.u32 %v1317, %v1333
    %v1336 = vor.u32 %v1334, %v1335
    %v1337 = vsub.s32 4294967266, %v1332
    %v1338 = vadd.s32 %v1337, 127
    %v1339 = vshll.u32 %v1338, 23
    %v1340 = vor.u32 4788187, %v1339
    %v1341 = vand.u32 2147483647, %v1340
    %v1343 = vcvt.s32.f32 %v1336
    %v1344 = vmul.f32 %v1343, %v1341
    %v1345 = vxor.u32 %v1344, 2147483648
    %v1346 = vsel %vm1263, %v1345, %v1344
    %v1347 = vsub.s32 4, %v1323
    %v1348 = vsel %vm1263, %v1347, %v1323
    %v1349 = vsel %vm1262, %v1144, %v1346
    %v1350 = vsel %vm1262, 0, %v1348
    %v1351 = vcosq.f32.pop %v1349
    %v1352 = vsinq.f32.pop %v1349
    %vm1353 = vweird.f32 %v1144
    %v1354 = vadd.s32 %v1350, 3
    %v1355 = vand.u32 %v1354, 3
    %vm1356 = vcmp.lt.s32.totalorder %v1355, 2
    %vm1357 = vcmp.eq.s32.totalorder %v1355, 0
    %v1358 = vxor.u32 %v1352, 2147483648
    %v1359 = vsel %vm1357, %v1351, %v1358
    %vm1360 = vcmp.eq.s32.totalorder %v1355, 2
    %v1361 = vxor.u32 %v1351, 2147483648
    %v1362 = vsel %vm1360, %v1361, %v1352
    %v1363 = vsel %vm1356, %v1359, %v1362
    %v1364 = vsel %vm1353, nan, %v1363
    %v1365 = vand.u32 2147483647, %v1149
    %vm1366 = vcmp.le.f32.partialorder %v1365, 0.7853982
    %vm1367 = vcmp.lt.s32.totalorder %v1149, 0
    %v1368 = vand.u32 %v1149, 2139095040
    %v1369 = vshrl.u32 %v1368, 23
    %v1370 = vsub.s32 %v1369, 127
    %v1371 = vand.u32 2147483647, %v1149
    %v1372 = vand.u32 %v1371, 8388607
    %v1373 = vor.u32 %v1372, 8388608
    %v1374 = vsub.s32 0, %v1373
    %v1375 = vadd.s32 %v1370, 1
    %vm1376 = vcmp.gt.s32.totalorder %v1375, 0
    %v1377 = vsel %vm1376, %v1375, 0
    %v1378 = vshrl.u32 %v1377, 5
    %v1379 = vand.u32 %v1377, 31
    %v1380 = vsub.s32 32, %v1379
    %v1381 = vshrl.u32 683565275, %v1380
    %v1382 = vshll.u32 683565275, %v1379
    %v1383 = vshrl.u32 2475754826, %v1380
    %v1384 = vor.u32 %v1382, %v1383
    %v1385 = vshll.u32 2475754826, %v1379
    %v1386 = vshrl.u32 2131351028, %v1380
    %v1387 = vor.u32 %v1385, %v1386
    %v1388 = vshll.u32 2131351028, %v1379
    %v1389 = vshrl.u32 2102212464, %v1380
    %v1390 = vor.u32 %v1388, %v1389
    %v1391 = vshll.u32 2102212464, %v1379
    %v1392 = vshrl.u32 920167782, %v1380
    %v1393 = vor.u32 %v1391, %v1392
    %v1394 = vshll.u32 920167782, %v1379
    %v1395 = vshrl.u32 1326507024, %v1380
    %v1396 = vor.u32 %v1394, %v1395
    %vm1397 = vcmp.lt.s32.totalorder %v1378, 1
    %vm1398 = vcmp.lt.s32.totalorder %v1378, 2
    %vm1399 = vcmp.lt.s32.totalorder %v1378, 3
    %vm1400 = vcmp.lt.s32.totalorder %v1378, 4
    %v1401 = vsel %vm1397, %v1381, %v1384
    %v1402 = vsel %vm1400, %v1390, 2102212464
    %v1403 = vsel %vm1399, %v1387, %v1402
    %v1404 = vsel %vm1398, %v1401, %v1403
    %v1405 = vsel %vm1397, %v1384, %v1387
    %v1406 = vsel %vm1400, %v1393, 920167782
    %v1407 = vsel %vm1399, %v1390, %v1406
    %v1408 = vsel %vm1398, %v1405, %v1407
    %v1409 = vsel %vm1397, %v1387, %v1390
    %v1410 = vsel %vm1400, %v1396, 1326507024
    %v1411 = vsel %vm1399, %v1393, %v1410
    %v1412 = vsel %vm1398, %v1409, %v1411
    %v1413 = vshll.u32 %v1373, 8
    %v1414 = vmul.u32.u64.compose %v1413, %v1412
    %v1415 = vextract.low.u32 %v1414
    %v1416 = vextract.high.u32 %v1414
    %v1417 = vmul.u32.u64.compose %v1413, %v1408
    %v1418 = vextract.low.u32 %v1417
    %v1419 = vextract.high.u32 %v1417
    %v1420 = vmul.u32 %v1413, %v1404
    %v1421 = vadd.s32 %v1416, %v1418
    %vm1422 = vc.u32 %v1416, %v1418
    %v1423 = vadd.s32 %v1419, 1
    %v1424 = vsel %vm1422, %v1423, %v1419
    %v1425 = vadd.s32 %v1420, %v1424
    %v1426 = vadd.s32 %v1425, 536870912
    %v1427 = vshrl.u32 %v1426, 30
    %v1428 = vshll.u32 %v1427, 30
    %v1429 = vsub.s32 %v1425, %v1428
    %vm1430 = vcmp.lt.s32.totalorder %v1429, 0
    %v1431 = vsub.s32 0, %v1429
    %v1432 = vsel %vm1430, %v1431, %v1429
    %v1433 = vclz %v1432
    %v1434 = vsub.s32 %v1433, 2
    %vm1435 = vcmp.gt.s32.totalorder 0, %v1434
    %v1436 = vsel %vm1435, 0, %v1434
    %v1437 = vsub.s32 32, %v1436
    %v1438 = vshll.u32 %v1429, %v1436
    %v1439 = vshrl.u32 %v1421, %v1437
    %v1440 = vor.u32 %v1438, %v1439
    %v1441 = vsub.s32 4294967266, %v1436
    %v1442 = vadd.s32 %v1441, 127
    %v1443 = vshll.u32 %v1442, 23
    %v1444 = vor.u32 4788187, %v1443
    %v1445 = vand.u32 2147483647, %v1444
    %v1447 = vcvt.s32.f32 %v1440
    %v1448 = vmul.f32 %v1447, %v1445
    %v1449 = vxor.u32 %v1448, 2147483648
    %v1450 = vsel %vm1367, %v1449, %v1448
    %v1451 = vsub.s32 4, %v1427
    %v1452 = vsel %vm1367, %v1451, %v1427
    %v1453 = vsel %vm1366, %v1149, %v1450
    %v1454 = vsel %vm1366, 0, %v1452
    %v1455 = vcosq.f32.pop %v1453
    %v1456 = vsinq.f32.pop %v1453
    %vm1457 = vweird.f32 %v1149
    %v1458 = vadd.s32 %v1454, 3
    %v1459 = vand.u32 %v1458, 3
    %vm1460 = vcmp.lt.s32.totalorder %v1459, 2
    %vm1461 = vcmp.eq.s32.totalorder %v1459, 0
    %v1462 = vxor.u32 %v1456, 2147483648
    %v1463 = vsel %vm1461, %v1455, %v1462
    %vm1464 = vcmp.eq.s32.totalorder %v1459, 2
    %v1465 = vxor.u32 %v1455, 2147483648
    %v1466 = vsel %vm1464, %v1465, %v1456
    %v1467 = vsel %vm1460, %v1463, %v1466
    %v1468 = vsel %vm1457, nan, %v1467
    %v1469 = vand.u32 2147483647, %v1154
    %vm1470 = vcmp.le.f32.partialorder %v1469, 0.7853982
    %vm1471 = vcmp.lt.s32.totalorder %v1154, 0
    %v1472 = vand.u32 %v1154, 2139095040
    %v1473 = vshrl.u32 %v1472, 23
    %v1474 = vsub.s32 %v1473, 127
    %v1475 = vand.u32 2147483647, %v1154
    %v1476 = vand.u32 %v1475, 8388607
    %v1477 = vor.u32 %v1476, 8388608
    %v1478 = vsub.s32 0, %v1477
    %v1479 = vadd.s32 %v1474, 1
    %vm1480 = vcmp.gt.s32.totalorder %v1479, 0
    %v1481 = vsel %vm1480, %v1479, 0
    %v1482 = vshrl.u32 %v1481, 5
    %v1483 = vand.u32 %v1481, 31
    %v1484 = vsub.s32 32, %v1483
    %v1485 = vshrl.u32 683565275, %v1484
    %v1486 = vshll.u32 683565275, %v1483
    %v1487 = vshrl.u32 2475754826, %v1484
    %v1488 = vor.u32 %v1486, %v1487
    %v1489 = vshll.u32 2475754826, %v1483
    %v1490 = vshrl.u32 2131351028, %v1484
    %v1491 = vor.u32 %v1489, %v1490
    %v1492 = vshll.u32 2131351028, %v1483
    %v1493 = vshrl.u32 2102212464, %v1484
    %v1494 = vor.u32 %v1492, %v1493
    %v1495 = vshll.u32 2102212464, %v1483
    %v1496 = vshrl.u32 920167782, %v1484
    %v1497 = vor.u32 %v1495, %v1496
    %v1498 = vshll.u32 920167782, %v1483
    %v1499 = vshrl.u32 1326507024, %v1484
    %v1500 = vor.u32 %v1498, %v1499
    %vm1501 = vcmp.lt.s32.totalorder %v1482, 1
    %vm1502 = vcmp.lt.s32.totalorder %v1482, 2
    %vm1503 = vcmp.lt.s32.totalorder %v1482, 3
    %vm1504 = vcmp.lt.s32.totalorder %v1482, 4
    %v1505 = vsel %vm1501, %v1485, %v1488
    %v1506 = vsel %vm1504, %v1494, 2102212464
    %v1507 = vsel %vm1503, %v1491, %v1506
    %v1508 = vsel %vm1502, %v1505, %v1507
    %v1509 = vsel %vm1501, %v1488, %v1491
    %v1510 = vsel %vm1504, %v1497, 920167782
    %v1511 = vsel %vm1503, %v1494, %v1510
    %v1512 = vsel %vm1502, %v1509, %v1511
    %v1513 = vsel %vm1501, %v1491, %v1494
    %v1514 = vsel %vm1504, %v1500, 1326507024
    %v1515 = vsel %vm1503, %v1497, %v1514
    %v1516 = vsel %vm1502, %v1513, %v1515
    %v1517 = vshll.u32 %v1477, 8
    %v1518 = vmul.u32.u64.compose %v1517, %v1516
    %v1519 = vextract.low.u32 %v1518
    %v1520 = vextract.high.u32 %v1518
    %v1521 = vmul.u32.u64.compose %v1517, %v1512
    %v1522 = vextract.low.u32 %v1521
    %v1523 = vextract.high.u32 %v1521
    %v1524 = vmul.u32 %v1517, %v1508
    %v1525 = vadd.s32 %v1520, %v1522
    %vm1526 = vc.u32 %v1520, %v1522
    %v1527 = vadd.s32 %v1523, 1
    %v1528 = vsel %vm1526, %v1527, %v1523
    %v1529 = vadd.s32 %v1524, %v1528
    %v1530 = vadd.s32 %v1529, 536870912
    %v1531 = vshrl.u32 %v1530, 30
    %v1532 = vshll.u32 %v1531, 30
    %v1533 = vsub.s32 %v1529, %v1532
    %vm1534 = vcmp.lt.s32.totalorder %v1533, 0
    %v1535 = vsub.s32 0, %v1533
    %v1536 = vsel %vm1534, %v1535, %v1533
    %v1537 = vclz %v1536
    %v1538 = vsub.s32 %v1537, 2
    %vm1539 = vcmp.gt.s32.totalorder 0, %v1538
    %v1540 = vsel %vm1539, 0, %v1538
    %v1541 = vsub.s32 32, %v1540
    %v1542 = vshll.u32 %v1533, %v1540
    %v1543 = vshrl.u32 %v1525, %v1541
    %v1544 = vor.u32 %v1542, %v1543
    %v1545 = vsub.s32 4294967266, %v1540
    %v1546 = vadd.s32 %v1545, 127
    %v1547 = vshll.u32 %v1546, 23
    %v1548 = vor.u32 4788187, %v1547
    %v1549 = vand.u32 2147483647, %v1548
    %v1551 = vcvt.s32.f32 %v1544
    %v1552 = vmul.f32 %v1551, %v1549
    %v1553 = vxor.u32 %v1552, 2147483648
    %v1554 = vsel %vm1471, %v1553, %v1552
    %v1555 = vsub.s32 4, %v1531
    %v1556 = vsel %vm1471, %v1555, %v1531
    %v1557 = vsel %vm1470, %v1154, %v1554
    %v1558 = vsel %vm1470, 0, %v1556
    %v1559 = vcosq.f32.pop %v1557
    %v1560 = vsinq.f32.pop %v1557
    %vm1561 = vweird.f32 %v1154
    %v1562 = vadd.s32 %v1558, 3
    %v1563 = vand.u32 %v1562, 3
    %vm1564 = vcmp.lt.s32.totalorder %v1563, 2
    %vm1565 = vcmp.eq.s32.totalorder %v1563, 0
    %v1566 = vxor.u32 %v1560, 2147483648
    %v1567 = vsel %vm1565, %v1559, %v1566
    %vm1568 = vcmp.eq.s32.totalorder %v1563, 2
    %v1569 = vxor.u32 %v1559, 2147483648
    %v1570 = vsel %vm1568, %v1569, %v1560
    %v1571 = vsel %vm1564, %v1567, %v1570
    %v1572 = vsel %vm1561, nan, %v1571
    %v1573 = vld [vmem:[%s12] sm:$0xff]
    %v1574 = vld [vmem:[%s12 + $0x8] sm:$0xff]
    %v1575 = vld [vmem:[%s13] sm:$0xff]
    %v1576 = vld [vmem:[%s13 + $0x8] sm:$0xff]
    %1578 = vset.pattern.permute.xlu0 0
    %1579 = vperm.xlu0 %1578, %v1575
    %v1580 = vpop.permute.xlu0 %1579
    %1583 = vset.pattern.permute.xlu0 0
    %1584 = vperm.xlu0 %1583, %v1576
    %v1585 = vpop.permute.xlu0 %1584
    %v1588 = vsel %vm1059, %v1573, 0
    %v1591 = vsel %vm1059, %v1574, 0
    %1593 = vmatprep.subr.mxu0 0.0
    %1594 = vmatpush1.msra.mxu0 %v1260
    %1595 = vmatprep.subr.mxu0 0.0
    %1596 = vmatpush1.msra.mxu0 %v1364
    %1597 = vmatprep.subr.mxu0 0.0
    %1598 = vmatpush1.msra.mxu0 %v1468
    %1599 = vmatprep.subr.mxu0 0.0
    %1600 = vmatpush1.msra.mxu0 %v1572
    %1601 = vmatprep.subr.mxu0 0.0
    %1602 = vmatpush1.msra.mxu0 0.0
    %1603 = vmatprep.subr.mxu0 0.0
    %1604 = vmatpush1.msra.mxu0 0.0
    %1605 = vmatprep.subr.mxu0 0.0
    %1606 = vmatpush1.msra.mxu0 0.0
    %1607 = vmatprep.subr.mxu0 0.0
    %1608 = vmatpush1.msra.mxu0 0.0
    %1609 = vmatprep.subr.mxu0 0.0
    %1610 = vmatpush1.msra.mxu0 0.0
    %1611 = vmatprep.subr.mxu0 0.0
    %1612 = vmatpush1.msra.mxu0 0.0
    %1613 = vmatprep.subr.mxu0 0.0
    %1614 = vmatpush1.msra.mxu0 0.0
    %1615 = vmatprep.subr.mxu0 0.0
    %1616 = vmatpush1.msra.mxu0 0.0
    %1617 = vmatprep.subr.mxu0 0.0
    %1618 = vmatpush1.msra.mxu0 0.0
    %1619 = vmatprep.subr.mxu0 0.0
    %1620 = vmatpush1.msra.mxu0 0.0
    %1621 = vmatprep.subr.mxu0 0.0
    %1622 = vmatpush1.msra.mxu0 0.0
    %1623 = vmatprep.subr.mxu0 0.0
    %1624 = vmatpush1.msra.mxu0 0.0
    %1625 = vmatprep.subr.mxu0 0.0
    %1626 = vmatpush1.msra.mxu0 0.0
    %1627 = vmatprep.subr.mxu0 0.0
    %1628 = vmatpush1.msra.mxu0 0.0
    %1629 = vmatprep.subr.mxu0 0.0
    %1630 = vmatpush1.msra.mxu0 0.0
    %1631 = vmatprep.subr.mxu0 0.0
    %1632 = vmatpush1.msra.mxu0 0.0
    %1633 = vmatprep.subr.mxu0 0.0
    %1634 = vmatpush1.msra.mxu0 0.0
    %1635 = vmatprep.subr.mxu0 0.0
    %1636 = vmatpush1.msra.mxu0 0.0
    %1637 = vmatprep.subr.mxu0 0.0
    %1638 = vmatpush1.msra.mxu0 0.0
    %1639 = vmatprep.subr.mxu0 0.0
    %1640 = vmatpush1.msra.mxu0 0.0
    %1641 = vmatprep.subr.mxu0 0.0
    %1642 = vmatpush1.msra.mxu0 0.0
    %1643 = vmatprep.subr.mxu0 0.0
    %1644 = vmatpush1.msra.mxu0 0.0
    %1645 = vmatprep.subr.mxu0 0.0
    %1646 = vmatpush1.msra.mxu0 0.0
    %1647 = vmatprep.subr.mxu0 0.0
    %1648 = vmatpush1.msra.mxu0 0.0
    %1649 = vmatprep.subr.mxu0 0.0
    %1650 = vmatpush1.msra.mxu0 0.0
    %1651 = vmatprep.subr.mxu0 0.0
    %1652 = vmatpush1.msra.mxu0 0.0
    %1653 = vmatprep.subr.mxu0 0.0
    %1654 = vmatpush1.msra.mxu0 0.0
    %1655 = vmatprep.subr.mxu0 0.0
    %1656 = vmatpush1.msra.mxu0 0.0
    %1657 = vmatprep.mubr.f32.mxu0 0.0
    %1658 = vmatmul.mubr.f32.gmra.mrb[0].mxu0 %v1588
    %v1659 = vpop.f32.mrb[0].mxu0
    %v1660 = vadd.f32 %v1580, %v1659
    %v1661 = vpop.f32.mrb[0].mxu0
    %1662 = vmatprep.mubr.f32.mxu0 0.0
    %1663 = vmatmul.mubr.f32.gmra.mrb[0].mxu0 %v1591
    %v1664 = vpop.f32.mrb[0].mxu0
    %v1665 = vadd.f32 %v1585, %v1664
    %v1666 = vpop.f32.mrb[0].mxu0
    %1667 = vdwg.mxu0
    %v1668 = vand.u32 2147483647, %v1660
    %vm1669 = vcmp.le.f32.partialorder %v1668, 0.7853982
    %vm1670 = vcmp.lt.s32.totalorder %v1660, 0
    %v1671 = vand.u32 %v1660, 2139095040
    %v1672 = vshrl.u32 %v1671, 23
    %v1673 = vsub.s32 %v1672, 127
    %v1674 = vand.u32 2147483647, %v1660
    %v1675 = vand.u32 %v1674, 8388607
    %v1676 = vor.u32 %v1675, 8388608
    %v1677 = vsub.s32 0, %v1676
    %v1678 = vadd.s32 %v1673, 1
    %vm1679 = vcmp.gt.s32.totalorder %v1678, 0
    %v1680 = vsel %vm1679, %v1678, 0
    %v1681 = vshrl.u32 %v1680, 5
    %v1682 = vand.u32 %v1680, 31
    %v1683 = vsub.s32 32, %v1682
    %v1684 = vshrl.u32 683565275, %v1683
    %v1685 = vshll.u32 683565275, %v1682
    %v1686 = vshrl.u32 2475754826, %v1683
    %v1687 = vor.u32 %v1685, %v1686
    %v1688 = vshll.u32 2475754826, %v1682
    %v1689 = vshrl.u32 2131351028, %v1683
    %v1690 = vor.u32 %v1688, %v1689
    %v1691 = vshll.u32 2131351028, %v1682
    %v1692 = vshrl.u32 2102212464, %v1683
    %v1693 = vor.u32 %v1691, %v1692
    %v1694 = vshll.u32 2102212464, %v1682
    %v1695 = vshrl.u32 920167782, %v1683
    %v1696 = vor.u32 %v1694, %v1695
    %v1697 = vshll.u32 920167782, %v1682
    %v1698 = vshrl.u32 1326507024, %v1683
    %v1699 = vor.u32 %v1697, %v1698
    %vm1700 = vcmp.lt.s32.totalorder %v1681, 1
    %vm1701 = vcmp.lt.s32.totalorder %v1681, 2
    %vm1702 = vcmp.lt.s32.totalorder %v1681, 3
    %vm1703 = vcmp.lt.s32.totalorder %v1681, 4
    %v1704 = vsel %vm1700, %v1684, %v1687
    %v1705 = vsel %vm1703, %v1693, 2102212464
    %v1706 = vsel %vm1702, %v1690, %v1705
    %v1707 = vsel %vm1701, %v1704, %v1706
    %v1708 = vsel %vm1700, %v1687, %v1690
    %v1709 = vsel %vm1703, %v1696, 920167782
    %v1710 = vsel %vm1702, %v1693, %v1709
    %v1711 = vsel %vm1701, %v1708, %v1710
    %v1712 = vsel %vm1700, %v1690, %v1693
    %v1713 = vsel %vm1703, %v1699, 1326507024
    %v1714 = vsel %vm1702, %v1696, %v1713
    %v1715 = vsel %vm1701, %v1712, %v1714
    %v1716 = vshll.u32 %v1676, 8
    %v1717 = vmul.u32.u64.compose %v1716, %v1715
    %v1718 = vextract.low.u32 %v1717
    %v1719 = vextract.high.u32 %v1717
    %v1720 = vmul.u32.u64.compose %v1716, %v1711
    %v1721 = vextract.low.u32 %v1720
    %v1722 = vextract.high.u32 %v1720
    %v1723 = vmul.u32 %v1716, %v1707
    %v1724 = vadd.s32 %v1719, %v1721
    %vm1725 = vc.u32 %v1719, %v1721
    %v1726 = vadd.s32 %v1722, 1
    %v1727 = vsel %vm1725, %v1726, %v1722
    %v1728 = vadd.s32 %v1723, %v1727
    %v1729 = vadd.s32 %v1728, 536870912
    %v1730 = vshrl.u32 %v1729, 30
    %v1731 = vshll.u32 %v1730, 30
    %v1732 = vsub.s32 %v1728, %v1731
    %vm1733 = vcmp.lt.s32.totalorder %v1732, 0
    %v1734 = vsub.s32 0, %v1732
    %v1735 = vsel %vm1733, %v1734, %v1732
    %v1736 = vclz %v1735
    %v1737 = vsub.s32 %v1736, 2
    %vm1738 = vcmp.gt.s32.totalorder 0, %v1737
    %v1739 = vsel %vm1738, 0, %v1737
    %v1740 = vsub.s32 32, %v1739
    %v1741 = vshll.u32 %v1732, %v1739
    %v1742 = vshrl.u32 %v1724, %v1740
    %v1743 = vor.u32 %v1741, %v1742
    %v1744 = vsub.s32 4294967266, %v1739
    %v1745 = vadd.s32 %v1744, 127
    %v1746 = vshll.u32 %v1745, 23
    %v1747 = vor.u32 4788187, %v1746
    %v1748 = vand.u32 2147483647, %v1747
    %v1750 = vcvt.s32.f32 %v1743
    %v1751 = vmul.f32 %v1750, %v1748
    %v1752 = vxor.u32 %v1751, 2147483648
    %v1753 = vsel %vm1670, %v1752, %v1751
    %v1754 = vsub.s32 4, %v1730
    %v1755 = vsel %vm1670, %v1754, %v1730
    %v1756 = vsel %vm1669, %v1660, %v1753
    %v1757 = vsel %vm1669, 0, %v1755
    %v1758 = vcosq.f32.pop %v1756
    %v1759 = vsinq.f32.pop %v1756
    %vm1760 = vweird.f32 %v1660
    %v1761 = vadd.s32 %v1757, 3
    %v1762 = vand.u32 %v1761, 3
    %vm1763 = vcmp.lt.s32.totalorder %v1762, 2
    %vm1764 = vcmp.eq.s32.totalorder %v1762, 0
    %v1765 = vxor.u32 %v1759, 2147483648
    %v1766 = vsel %vm1764, %v1758, %v1765
    %vm1767 = vcmp.eq.s32.totalorder %v1762, 2
    %v1768 = vxor.u32 %v1758, 2147483648
    %v1769 = vsel %vm1767, %v1768, %v1759
    %v1770 = vsel %vm1763, %v1766, %v1769
    %v1771 = vsel %vm1760, nan, %v1770
    %v1772 = vand.u32 2147483647, %v1665
    %vm1773 = vcmp.le.f32.partialorder %v1772, 0.7853982
    %vm1774 = vcmp.lt.s32.totalorder %v1665, 0
    %v1775 = vand.u32 %v1665, 2139095040
    %v1776 = vshrl.u32 %v1775, 23
    %v1777 = vsub.s32 %v1776, 127
    %v1778 = vand.u32 2147483647, %v1665
    %v1779 = vand.u32 %v1778, 8388607
    %v1780 = vor.u32 %v1779, 8388608
    %v1781 = vsub.s32 0, %v1780
    %v1782 = vadd.s32 %v1777, 1
    %vm1783 = vcmp.gt.s32.totalorder %v1782, 0
    %v1784 = vsel %vm1783, %v1782, 0
    %v1785 = vshrl.u32 %v1784, 5
    %v1786 = vand.u32 %v1784, 31
    %v1787 = vsub.s32 32, %v1786
    %v1788 = vshrl.u32 683565275, %v1787
    %v1789 = vshll.u32 683565275, %v1786
    %v1790 = vshrl.u32 2475754826, %v1787
    %v1791 = vor.u32 %v1789, %v1790
    %v1792 = vshll.u32 2475754826, %v1786
    %v1793 = vshrl.u32 2131351028, %v1787
    %v1794 = vor.u32 %v1792, %v1793
    %v1795 = vshll.u32 2131351028, %v1786
    %v1796 = vshrl.u32 2102212464, %v1787
    %v1797 = vor.u32 %v1795, %v1796
    %v1798 = vshll.u32 2102212464, %v1786
    %v1799 = vshrl.u32 920167782, %v1787
    %v1800 = vor.u32 %v1798, %v1799
    %v1801 = vshll.u32 920167782, %v1786
    %v1802 = vshrl.u32 1326507024, %v1787
    %v1803 = vor.u32 %v1801, %v1802
    %vm1804 = vcmp.lt.s32.totalorder %v1785, 1
    %vm1805 = vcmp.lt.s32.totalorder %v1785, 2
    %vm1806 = vcmp.lt.s32.totalorder %v1785, 3
    %vm1807 = vcmp.lt.s32.totalorder %v1785, 4
    %v1808 = vsel %vm1804, %v1788, %v1791
    %v1809 = vsel %vm1807, %v1797, 2102212464
    %v1810 = vsel %vm1806, %v1794, %v1809
    %v1811 = vsel %vm1805, %v1808, %v1810
    %v1812 = vsel %vm1804, %v1791, %v1794
    %v1813 = vsel %vm1807, %v1800, 920167782
    %v1814 = vsel %vm1806, %v1797, %v1813
    %v1815 = vsel %vm1805, %v1812, %v1814
    %v1816 = vsel %vm1804, %v1794, %v1797
    %v1817 = vsel %vm1807, %v1803, 1326507024
    %v1818 = vsel %vm1806, %v1800, %v1817
    %v1819 = vsel %vm1805, %v1816, %v1818
    %v1820 = vshll.u32 %v1780, 8
    %v1821 = vmul.u32.u64.compose %v1820, %v1819
    %v1822 = vextract.low.u32 %v1821
    %v1823 = vextract.high.u32 %v1821
    %v1824 = vmul.u32.u64.compose %v1820, %v1815
    %v1825 = vextract.low.u32 %v1824
    %v1826 = vextract.high.u32 %v1824
    %v1827 = vmul.u32 %v1820, %v1811
    %v1828 = vadd.s32 %v1823, %v1825
    %vm1829 = vc.u32 %v1823, %v1825
    %v1830 = vadd.s32 %v1826, 1
    %v1831 = vsel %vm1829, %v1830, %v1826
    %v1832 = vadd.s32 %v1827, %v1831
    %v1833 = vadd.s32 %v1832, 536870912
    %v1834 = vshrl.u32 %v1833, 30
    %v1835 = vshll.u32 %v1834, 30
    %v1836 = vsub.s32 %v1832, %v1835
    %vm1837 = vcmp.lt.s32.totalorder %v1836, 0
    %v1838 = vsub.s32 0, %v1836
    %v1839 = vsel %vm1837, %v1838, %v1836
    %v1840 = vclz %v1839
    %v1841 = vsub.s32 %v1840, 2
    %vm1842 = vcmp.gt.s32.totalorder 0, %v1841
    %v1843 = vsel %vm1842, 0, %v1841
    %v1844 = vsub.s32 32, %v1843
    %v1845 = vshll.u32 %v1836, %v1843
    %v1846 = vshrl.u32 %v1828, %v1844
    %v1847 = vor.u32 %v1845, %v1846
    %v1848 = vsub.s32 4294967266, %v1843
    %v1849 = vadd.s32 %v1848, 127
    %v1850 = vshll.u32 %v1849, 23
    %v1851 = vor.u32 4788187, %v1850
    %v1852 = vand.u32 2147483647, %v1851
    %v1854 = vcvt.s32.f32 %v1847
    %v1855 = vmul.f32 %v1854, %v1852
    %v1856 = vxor.u32 %v1855, 2147483648
    %v1857 = vsel %vm1774, %v1856, %v1855
    %v1858 = vsub.s32 4, %v1834
    %v1859 = vsel %vm1774, %v1858, %v1834
    %v1860 = vsel %vm1773, %v1665, %v1857
    %v1861 = vsel %vm1773, 0, %v1859
    %v1862 = vcosq.f32.pop %v1860
    %v1863 = vsinq.f32.pop %v1860
    %vm1864 = vweird.f32 %v1665
    %v1865 = vadd.s32 %v1861, 3
    %v1866 = vand.u32 %v1865, 3
    %vm1867 = vcmp.lt.s32.totalorder %v1866, 2
    %vm1868 = vcmp.eq.s32.totalorder %v1866, 0
    %v1869 = vxor.u32 %v1863, 2147483648
    %v1870 = vsel %vm1868, %v1862, %v1869
    %vm1871 = vcmp.eq.s32.totalorder %v1866, 2
    %v1872 = vxor.u32 %v1862, 2147483648
    %v1873 = vsel %vm1871, %v1872, %v1863
    %v1874 = vsel %vm1867, %v1870, %v1873
    %v1875 = vsel %vm1864, nan, %v1874
    %v1876 = vld [vmem:[%s14] sm:$0x7]
    %v1877 = vld [vmem:[%s15] sm:$0x7]
    %1879 = vset.pattern.permute.xlu0 0
    %1880 = vperm.xlu0 %1879, %v1877
    %v1881 = vpop.permute.xlu0 %1880
    %vm1883 = vcmask 130048
    %v1885 = vsel %vm1883, %v1876, 0
    %1887 = vmatprep.subr.mxu0 0.0
    %1888 = vmatpush1.msra.mxu0 %v1771
    %1889 = vmatprep.subr.mxu0 0.0
    %1890 = vmatpush1.msra.mxu0 %v1875
    %1891 = vmatprep.subr.mxu0 0.0
    %1892 = vmatpush1.msra.mxu0 0.0
    %1893 = vmatprep.subr.mxu0 0.0
    %1894 = vmatpush1.msra.mxu0 0.0
    %1895 = vmatprep.subr.mxu0 0.0
    %1896 = vmatpush1.msra.mxu0 0.0
    %1897 = vmatprep.subr.mxu0 0.0
    %1898 = vmatpush1.msra.mxu0 0.0
    %1899 = vmatprep.subr.mxu0 0.0
    %1900 = vmatpush1.msra.mxu0 0.0
    %1901 = vmatprep.subr.mxu0 0.0
    %1902 = vmatpush1.msra.mxu0 0.0
    %1903 = vmatprep.subr.mxu0 0.0
    %1904 = vmatpush1.msra.mxu0 0.0
    %1905 = vmatprep.subr.mxu0 0.0
    %1906 = vmatpush1.msra.mxu0 0.0
    %1907 = vmatprep.subr.mxu0 0.0
    %1908 = vmatpush1.msra.mxu0 0.0
    %1909 = vmatprep.subr.mxu0 0.0
    %1910 = vmatpush1.msra.mxu0 0.0
    %1911 = vmatprep.subr.mxu0 0.0
    %1912 = vmatpush1.msra.mxu0 0.0
    %1913 = vmatprep.subr.mxu0 0.0
    %1914 = vmatpush1.msra.mxu0 0.0
    %1915 = vmatprep.subr.mxu0 0.0
    %1916 = vmatpush1.msra.mxu0 0.0
    %1917 = vmatprep.subr.mxu0 0.0
    %1918 = vmatpush1.msra.mxu0 0.0
    %1919 = vmatprep.subr.mxu0 0.0
    %1920 = vmatpush1.msra.mxu0 0.0
    %1921 = vmatprep.subr.mxu0 0.0
    %1922 = vmatpush1.msra.mxu0 0.0
    %1923 = vmatprep.subr.mxu0 0.0
    %1924 = vmatpush1.msra.mxu0 0.0
    %1925 = vmatprep.subr.mxu0 0.0
    %1926 = vmatpush1.msra.mxu0 0.0
    %1927 = vmatprep.subr.mxu0 0.0
    %1928 = vmatpush1.msra.mxu0 0.0
    %1929 = vmatprep.subr.mxu0 0.0
    %1930 = vmatpush1.msra.mxu0 0.0
    %1931 = vmatprep.subr.mxu0 0.0
    %1932 = vmatpush1.msra.mxu0 0.0
    %1933 = vmatprep.subr.mxu0 0.0
    %1934 = vmatpush1.msra.mxu0 0.0
    %1935 = vmatprep.subr.mxu0 0.0
    %1936 = vmatpush1.msra.mxu0 0.0
    %1937 = vmatprep.subr.mxu0 0.0
    %1938 = vmatpush1.msra.mxu0 0.0
    %1939 = vmatprep.subr.mxu0 0.0
    %1940 = vmatpush1.msra.mxu0 0.0
    %1941 = vmatprep.subr.mxu0 0.0
    %1942 = vmatpush1.msra.mxu0 0.0
    %1943 = vmatprep.subr.mxu0 0.0
    %1944 = vmatpush1.msra.mxu0 0.0
    %1945 = vmatprep.subr.mxu0 0.0
    %1946 = vmatpush1.msra.mxu0 0.0
    %1947 = vmatprep.subr.mxu0 0.0
    %1948 = vmatpush1.msra.mxu0 0.0
    %1949 = vmatprep.subr.mxu0 0.0
    %1950 = vmatpush1.msra.mxu0 0.0
    %1951 = vmatprep.mubr.f32.mxu0 0.0
    %1952 = vmatmul.mubr.f32.gmra.mrb[0].mxu0 %v1885
    %v1953 = vpop.f32.mrb[0].mxu0
    %v1954 = vadd.f32 %v1881, %v1953
    %v1955 = vpop.f32.mrb[0].mxu0
    %1956 = vdwg.mxu0
    %v1957 = vand.u32 2147483647, %v1954
    %vm1958 = vcmp.le.f32.partialorder %v1957, 0.7853982
    %vm1959 = vcmp.lt.s32.totalorder %v1954, 0
    %v1960 = vand.u32 %v1954, 2139095040
    %v1961 = vshrl.u32 %v1960, 23
    %v1962 = vsub.s32 %v1961, 127
    %v1963 = vand.u32 2147483647, %v1954
    %v1964 = vand.u32 %v1963, 8388607
    %v1965 = vor.u32 %v1964, 8388608
    %v1966 = vsub.s32 0, %v1965
    %v1967 = vadd.s32 %v1962, 1
    %vm1968 = vcmp.gt.s32.totalorder %v1967, 0
    %v1969 = vsel %vm1968, %v1967, 0
    %v1970 = vshrl.u32 %v1969, 5
    %v1971 = vand.u32 %v1969, 31
    %v1972 = vsub.s32 32, %v1971
    %v1973 = vshrl.u32 683565275, %v1972
    %v1974 = vshll.u32 683565275, %v1971
    %v1975 = vshrl.u32 2475754826, %v1972
    %v1976 = vor.u32 %v1974, %v1975
    %v1977 = vshll.u32 2475754826, %v1971
    %v1978 = vshrl.u32 2131351028, %v1972
    %v1979 = vor.u32 %v1977, %v1978
    %v1980 = vshll.u32 2131351028, %v1971
    %v1981 = vshrl.u32 2102212464, %v1972
    %v1982 = vor.u32 %v1980, %v1981
    %v1983 = vshll.u32 2102212464, %v1971
    %v1984 = vshrl.u32 920167782, %v1972
    %v1985 = vor.u32 %v1983, %v1984
    %v1986 = vshll.u32 920167782, %v1971
    %v1987 = vshrl.u32 1326507024, %v1972
    %v1988 = vor.u32 %v1986, %v1987
    %vm1989 = vcmp.lt.s32.totalorder %v1970, 1
    %vm1990 = vcmp.lt.s32.totalorder %v1970, 2
    %vm1991 = vcmp.lt.s32.totalorder %v1970, 3
    %vm1992 = vcmp.lt.s32.totalorder %v1970, 4
    %v1993 = vsel %vm1989, %v1973, %v1976
    %v1994 = vsel %vm1992, %v1982, 2102212464
    %v1995 = vsel %vm1991, %v1979, %v1994
    %v1996 = vsel %vm1990, %v1993, %v1995
    %v1997 = vsel %vm1989, %v1976, %v1979
    %v1998 = vsel %vm1992, %v1985, 920167782
    %v1999 = vsel %vm1991, %v1982, %v1998
    %v2000 = vsel %vm1990, %v1997, %v1999
    %v2001 = vsel %vm1989, %v1979, %v1982
    %v2002 = vsel %vm1992, %v1988, 1326507024
    %v2003 = vsel %vm1991, %v1985, %v2002
    %v2004 = vsel %vm1990, %v2001, %v2003
    %v2005 = vshll.u32 %v1965, 8
    %v2006 = vmul.u32.u64.compose %v2005, %v2004
    %v2007 = vextract.low.u32 %v2006
    %v2008 = vextract.high.u32 %v2006
    %v2009 = vmul.u32.u64.compose %v2005, %v2000
    %v2010 = vextract.low.u32 %v2009
    %v2011 = vextract.high.u32 %v2009
    %v2012 = vmul.u32 %v2005, %v1996
    %v2013 = vadd.s32 %v2008, %v2010
    %vm2014 = vc.u32 %v2008, %v2010
    %v2015 = vadd.s32 %v2011, 1
    %v2016 = vsel %vm2014, %v2015, %v2011
    %v2017 = vadd.s32 %v2012, %v2016
    %v2018 = vadd.s32 %v2017, 536870912
    %v2019 = vshrl.u32 %v2018, 30
    %v2020 = vshll.u32 %v2019, 30
    %v2021 = vsub.s32 %v2017, %v2020
    %vm2022 = vcmp.lt.s32.totalorder %v2021, 0
    %v2023 = vsub.s32 0, %v2021
    %v2024 = vsel %vm2022, %v2023, %v2021
    %v2025 = vclz %v2024
    %v2026 = vsub.s32 %v2025, 2
    %vm2027 = vcmp.gt.s32.totalorder 0, %v2026
    %v2028 = vsel %vm2027, 0, %v2026
    %v2029 = vsub.s32 32, %v2028
    %v2030 = vshll.u32 %v2021, %v2028
    %v2031 = vshrl.u32 %v2013, %v2029
    %v2032 = vor.u32 %v2030, %v2031
    %v2033 = vsub.s32 4294967266, %v2028
    %v2034 = vadd.s32 %v2033, 127
    %v2035 = vshll.u32 %v2034, 23
    %v2036 = vor.u32 4788187, %v2035
    %v2037 = vand.u32 2147483647, %v2036
    %v2039 = vcvt.s32.f32 %v2032
    %v2040 = vmul.f32 %v2039, %v2037
    %v2041 = vxor.u32 %v2040, 2147483648
    %v2042 = vsel %vm1959, %v2041, %v2040
    %v2043 = vsub.s32 4, %v2019
    %v2044 = vsel %vm1959, %v2043, %v2019
    %v2045 = vsel %vm1958, %v1954, %v2042
    %v2046 = vsel %vm1958, 0, %v2044
    %v2047 = vcosq.f32.pop %v2045
    %v2048 = vsinq.f32.pop %v2045
    %vm2049 = vweird.f32 %v1954
    %v2050 = vadd.s32 %v2046, 3
    %v2051 = vand.u32 %v2050, 3
    %vm2052 = vcmp.lt.s32.totalorder %v2051, 2
    %vm2053 = vcmp.eq.s32.totalorder %v2051, 0
    %v2054 = vxor.u32 %v2048, 2147483648
    %v2055 = vsel %vm2053, %v2047, %v2054
    %vm2056 = vcmp.eq.s32.totalorder %v2051, 2
    %v2057 = vxor.u32 %v2047, 2147483648
    %v2058 = vsel %vm2056, %v2057, %v2048
    %v2059 = vsel %vm2052, %v2055, %v2058
    %v2060 = vsel %vm2049, nan, %v2059
    %vm2061 = vcmask 59392
    %2062 = vst.msk [vmem:[#allocation2] sm:$0x7] %vm2061, %v2060
    // Predicated region
    $region66: #{network2_forward.1} parent=1 // pred_check
      _
    $region67: #{network2_forward.1} parent=1 // pred_check_branch
      %2064 = sbr.rel (0) target = $region69
    $region68: #{network2_forward.1} parent=1 // pred_region
      %s2066 = ssub.s32 64, 64
      %2067 = vsyncadd [#allocation3], %s2066
      %s2069 = sshll.u32 [#allocation2], 4
      %s2070 = int_to_ptr.vmem [resolvable:$true] %s2069
      %2072 = dma.vmem_to_hbm [thread:$0]  %s2070, 64, %s16, [#allocation3]
    $region69: #{network2_forward.1} parent=1 // pred_fallthru
      _
    // Predicated region
    $region70: #{network2_forward.1} parent=1 // pred_check
      _
    $region71: #{network2_forward.1} parent=1 // pred_check_branch
      %2074 = sbr.rel (0) target = $region73
    $region72: #{network2_forward.1} parent=1 // pred_region
      %2075 = dma.done [#allocation3], 64
    $region73: #{network2_forward.1} parent=1 // pred_fallthru
      _
    %2076 = vsyncpa [#allocation3], 1

</llo_original>
